<compile_context>
chip_gen: v6e
topology: v6e:2x2x1
jax: 0.10.0
libtpu: 0.0.40
codegen_flags: <defaults>
</compile_context>

<pallas_src>
import jax
import jax.numpy as jnp
from jax.experimental import pallas as pl
from jax.experimental.pallas import tpu as pltpu


def _make_edgeconv_kernel(num_layers, k, tile_p, mxu_dtype):
    inv_k = 1.0 / float(k)

    def kernel(nb_ref, ft_ref, w1c_ref, w1d_ref, b1_ref, *rest):
        # rest = [w_l, b_l] * (num_layers-1), w_sc, b_sc, out_ref
        out_ref = rest[-1]
        pr = rest[:-1]
        nl1 = num_layers - 1
        ws = [pr[2 * l] for l in range(nl1)]
        bs = [pr[2 * l + 1] for l in range(nl1)]
        wsc_ref, bsc_ref = pr[2 * nl1], pr[2 * nl1 + 1]

        ft = ft_ref[...]                                   # (C_in, tile_p), stream dtype
        ft_mx = ft.astype(mxu_dtype)

        # Layer-1 split: W1 @ [x_i ; x_j - x_i] == W1_c @ x_i + W1_d @ (x_j - x_i).
        # The center term is shared by all k neighbors -> one matmul per node tile,
        # replicated over the k lane chunks (bias fused in; single broadcast).
        ctr = jnp.dot(w1c_ref[...], ft_mx, preferred_element_type=jnp.float32)
        cb = ctr + b1_ref[...]                             # (C1, tile_p), f32
        cb_wide = jnp.concatenate([cb] * k, axis=-1)       # (C1, k*tile_p)

        # (x_j - x_i) slab for ALL k neighbors at once; lanes = [neighbor chunk, node].
        ft_wide = jnp.concatenate([ft] * k, axis=-1)       # (C_in, k*tile_p)
        diff = (nb_ref[...] - ft_wide).astype(mxu_dtype)

        # One matmul per layer over the whole k-wide slab (bf16 MXU, f32 accumulation);
        # BN scale is folded into the weights so the epilogue is add-bias + ReLU only.
        h = jnp.dot(w1d_ref[...], diff, preferred_element_type=jnp.float32)
        h = jnp.maximum(h + cb_wide, 0.0)
        for l in range(nl1):
            h = jnp.dot(ws[l][...], h.astype(mxu_dtype),
                        preferred_element_type=jnp.float32)
            h = jnp.maximum(h + bs[l][...], 0.0)

        # Mean over k = sum of the k lane-aligned chunks.
        acc = h[:, :tile_p]
        for j in range(1, k):
            acc = acc + h[:, j * tile_p:(j + 1) * tile_p]
        fts_mean = acc * inv_k                             # (C_out, tile_p)

        # Shortcut 1x1 conv (BN-folded weights) + residual add + final ReLU.
        sc = jnp.dot(wsc_ref[...], ft_mx, preferred_element_type=jnp.float32)
        sc = sc + bsc_ref[...]
        out_ref[...] = jnp.maximum(sc + fts_mean, 0.0).astype(out_ref.dtype)

    return kernel


def edge_conv_block(points, features, params, *, k, tile_p=1024,
                    stream_dtype=jnp.bfloat16, mxu_dtype=jnp.bfloat16):
    """points: (B, C_pts, P), features: (B, C_in, P) -> (B, C_out, P)."""
    B, C_in, P = features.shape
    num_layers = len(params["conv_w"])
    C_out = params["conv_w"][-1].shape[0]

    # ---- kNN over `points` (plain-JAX glue; top_k has no Pallas equivalent) ----
    x = points.astype(jnp.float32)
    inner = jnp.einsum("bci,bcj->bij", x, x)
    xx = jnp.sum(x * x, axis=1, keepdims=True)
    pd = 2.0 * inner - xx - jnp.transpose(xx, (0, 2, 1))            # -||xi-xj||^2
    idx = jax.lax.top_k(pd, k + 1)[1][:, :, 1:]                     # (B,P,k) drop self

    # ---- neighbor gather (plain-JAX glue), streamed in stream_dtype ----
    feats_t = jnp.transpose(features, (0, 2, 1)).astype(stream_dtype)   # (B,P,C_in)
    b_idx = jnp.arange(B)[:, None, None]
    nb = feats_t[b_idx, idx]                                            # (B,P,k,C_in)

    # ---- node tiling along P (nodes sit on lanes -> tile_p multiple of 128) ----
    P128 = ((P + 127) // 128) * 128
    tile_p = max(128, min(int(tile_p), P128))
    tile_p = (tile_p // 128) * 128
    # v7x has 2 TensorCores: keep at least 2 total grid steps whenever possible.
    while B * (-(-P128 // tile_p)) < 2 and tile_p > 128:
        tile_p = max(128, (tile_p // 2) // 128 * 128)
    n_tiles = -(-P128 // tile_p)
    P_pad = n_tiles * tile_p

    # Neighbor slab in the exact per-tile block layout (C_in, [tile i][neighbor j][node]):
    # nb_slab[b, c, i*k*tile_p + j*tile_p + t] = feature c of neighbor j of node i*tile_p+t.
    nb = jnp.pad(nb, ((0, 0), (0, P_pad - P), (0, 0), (0, 0)))
    nb = nb.reshape(B, n_tiles, tile_p, k, C_in)
    nb_slab = jnp.transpose(nb, (0, 4, 1, 3, 2)).reshape(B, C_in, n_tiles * k * tile_p)

    ft = jnp.pad(features, ((0, 0), (0, 0), (0, P_pad - P))).astype(stream_dtype)

    # ---- parameters: fold BN scale into the weights; bf16 MXU operands ----
    w1 = params["conv_w"][0]                                        # (C1, 2*C_in)
    s1, b1 = params["bn_scale"][0], params["bn_bias"][0]
    flat = [(w1[:, :C_in] * s1).astype(mxu_dtype),                  # center half
            (w1[:, C_in:] * s1).astype(mxu_dtype),                  # difference half
            b1.astype(jnp.float32)]
    for l in range(1, num_layers):
        flat += [(params["conv_w"][l] * params["bn_scale"][l]).astype(mxu_dtype),
                 params["bn_bias"][l].astype(jnp.float32)]
    if "sc_w" in params:                                            # conv shortcut + BN
        flat += [(params["sc_w"] * params["sc_scale"]).astype(mxu_dtype),
                 params["sc_bias"].astype(jnp.float32)]
    else:                                                           # identity shortcut
        flat += [jnp.eye(C_out, C_in).astype(mxu_dtype),
                 jnp.zeros((C_out, 1), jnp.float32)]

    grid = (B, n_tiles)
    in_specs = (
        [pl.BlockSpec((None, C_in, k * tile_p), lambda b, i: (b, 0, i)),
         pl.BlockSpec((None, C_in, tile_p), lambda b, i: (b, 0, i))]
        + [pl.BlockSpec(a.shape, lambda b, i: (0, 0)) for a in flat]  # resident weights
    )
    out_spec = pl.BlockSpec((None, C_out, tile_p), lambda b, i: (b, 0, i))

    kernel = _make_edgeconv_kernel(num_layers, k, tile_p, mxu_dtype)
    out = pl.pallas_call(
        kernel,
        out_shape=jax.ShapeDtypeStruct((B, C_out, P_pad), jnp.float32),
        grid_spec=pltpu.PrefetchScalarGridSpec(
            num_scalar_prefetch=0,
            grid=grid,
            in_specs=in_specs,
            out_specs=out_spec,
        ),
        compiler_params=pltpu.CompilerParams(
            dimension_semantics=("parallel", "parallel"),   # shard across v7x TCs
            vmem_limit_bytes=48 * 1024 * 1024,              # headroom on v7x (64 MiB)
        ),
    )(nb_slab, ft, *flat)

    return out[:, :, :P]                                            # (B, C_out, P)


def init_params(key, in_feat, out_feats, eps=1e-5):
    """Deterministic synthetic parameters; BN folded to per-channel scale/bias."""
    params = {"conv_w": [], "bn_scale": [], "bn_bias": []}
    c_prev = 2 * in_feat
    for c_out in out_feats:
        key, k1, k2, k3, k4, k5 = jax.random.split(key, 6)
        w = 0.1 * jax.random.normal(k1, (c_out, c_prev), jnp.float32)  # Conv2d 1x1
        gamma = 1.0 + 0.1 * jax.random.normal(k2, (c_out,), jnp.float32)
        beta = 0.1 * jax.random.normal(k3, (c_out,), jnp.float32)
        mu = 0.1 * jax.random.normal(k4, (c_out,), jnp.float32)
        var = 1.0 + 0.1 * jax.random.uniform(k5, (c_out,), jnp.float32)
        scale = gamma / jnp.sqrt(var + eps)
        params["conv_w"].append(w)
        params["bn_scale"].append(scale.reshape(c_out, 1))
        params["bn_bias"].append((beta - mu * scale).reshape(c_out, 1))
        c_prev = c_out
    # shortcut branch (active because in_feat != out_feats[-1])
    key, k1, k2, k3, k4, k5 = jax.random.split(key, 6)
    c_out = out_feats[-1]
    params["sc_w"] = 0.1 * jax.random.normal(k1, (c_out, in_feat), jnp.float32)
    gamma = 1.0 + 0.1 * jax.random.normal(k2, (c_out,), jnp.float32)
    beta = 0.1 * jax.random.normal(k3, (c_out,), jnp.float32)
    mu = 0.1 * jax.random.normal(k4, (c_out,), jnp.float32)
    var = 1.0 + 0.1 * jax.random.uniform(k5, (c_out,), jnp.float32)
    scale = gamma / jnp.sqrt(var + eps)
    params["sc_scale"] = scale.reshape(c_out, 1)
    params["sc_bias"] = (beta - mu * scale).reshape(c_out, 1)
    return params


def reference(points, features, params, k):
    """Pure-JAX f32 reference reproducing EdgeConvBlock.forward semantics."""
    B, C_in, P = features.shape
    x = points.astype(jnp.float32)
    inner = jnp.einsum("bci,bcj->bij", x, x)
    xx = jnp.sum(x * x, axis=1, keepdims=True)
    pd = 2.0 * inner - xx - jnp.transpose(xx, (0, 2, 1))
    idx = jax.lax.top_k(pd, k + 1)[1][:, :, 1:]
    feats_t = jnp.transpose(features, (0, 2, 1)).astype(jnp.float32)
    b_idx = jnp.arange(B)[:, None, None]
    nb = feats_t[b_idx, idx]                                        # (B,P,k,C_in)
    center = feats_t[:, :, None, :]
    h = jnp.concatenate([jnp.broadcast_to(center, nb.shape), nb - center], axis=-1)
    for w, s, b in zip(params["conv_w"], params["bn_scale"], params["bn_bias"]):
        h = jnp.einsum("bpkc,dc->bpkd", h, w) * s[:, 0] + b[:, 0]
        h = jnp.maximum(h, 0.0)
    fts = jnp.mean(h, axis=2)                                       # (B,P,C_out)
    if "sc_w" in params:
        sc = (jnp.einsum("bpc,dc->bpd", feats_t, params["sc_w"])
              * params["sc_scale"][:, 0] + params["sc_bias"][:, 0])
    else:
        sc = feats_t
    out = jnp.maximum(sc + fts, 0.0)
    return jnp.transpose(out, (0, 2, 1))                            # (B,C_out,P)


if __name__ == "__main__":
    key = jax.random.PRNGKey(0)
    B, C_pts, C_in, P, k = 2, 3, 4, 120, 8          # P=120 exercises the padding path
    out_feats = (32, 64, 128)

    kp, kf, kw = jax.random.split(key, 3)
    points = jax.random.normal(kp, (B, C_pts, P), jnp.float32)
    features = jax.random.normal(kf, (B, C_in, P), jnp.float32)
    params = init_params(kw, C_in, out_feats)

    ref = reference(points, features, params, k)

    # 1) Exact-precision sanity check (f32 streaming + f32 MXU): tight tolerance.
    out_f32 = edge_conv_block(points, features, params, k=k,
                              stream_dtype=jnp.float32, mxu_dtype=jnp.float32)
    out_f32 = jax.block_until_ready(out_f32)
    err_f32 = float(jnp.max(jnp.abs(out_f32 - ref)))
    if not bool(jnp.allclose(out_f32, ref, atol=1e-3, rtol=1e-3)):
        raise AssertionError(f"f32 kernel mismatch vs reference, max err = {err_f32}")

    # 2) Production config (bf16 streamed activations + bf16 MXU operands, f32 accum):
    #    bf16 rounding of inputs/weights -> loosened tolerance vs the f32 reference.
    out_bf16 = edge_conv_block(points, features, params, k=k)
    out_bf16 = jax.block_until_ready(out_bf16)
    err_bf16 = float(jnp.max(jnp.abs(out_bf16 - ref)))
    if not bool(jnp.allclose(out_bf16, ref, atol=3e-2, rtol=3e-2)):
        raise AssertionError(f"bf16 kernel mismatch vs reference, max err = {err_bf16}")

    print("KERNEL_OK")
</pallas_src>

<mosaic_0001>
module attributes {stable_mosaic.version = 11 : i64} {
  func.func @kernel(%arg0: i32, %arg1: i32, %arg2: memref<1x4x1024xf32, #tpu.memory_space<vmem>>, %arg3: memref<1x4x128xf32, #tpu.memory_space<vmem>>, %arg4: memref<32x4xf32, #tpu.memory_space<vmem>>, %arg5: memref<32x4xf32, #tpu.memory_space<vmem>>, %arg6: memref<32x1xf32, #tpu.memory_space<vmem>>, %arg7: memref<64x32xf32, #tpu.memory_space<vmem>>, %arg8: memref<64x1xf32, #tpu.memory_space<vmem>>, %arg9: memref<128x64xf32, #tpu.memory_space<vmem>>, %arg10: memref<128x1xf32, #tpu.memory_space<vmem>>, %arg11: memref<128x4xf32, #tpu.memory_space<vmem>>, %arg12: memref<128x1xf32, #tpu.memory_space<vmem>>, %arg13: memref<1x128x128xf32, #tpu.memory_space<vmem>>) attributes {dimension_semantics = [#tpu.dimension_semantics<parallel>, #tpu.dimension_semantics<parallel>], iteration_bounds = array<i64: 2, 1>, scalar_prefetch = 0 : i64, scratch_operands = 0 : i64, tpu.core_type = #tpu.core_type<tc>, window_params = [{transform_indices = @transform_0, window_bounds = array<i64: 1, 4, 1024>}, {transform_indices = @transform_1, window_bounds = array<i64: 1, 4, 128>}, {pipeline_mode = #tpu.pipeline_mode<synchronous>, transform_indices = @transform_2, window_bounds = array<i64: 32, 4>}, {pipeline_mode = #tpu.pipeline_mode<synchronous>, transform_indices = @transform_3, window_bounds = array<i64: 32, 4>}, {pipeline_mode = #tpu.pipeline_mode<synchronous>, transform_indices = @transform_4, window_bounds = array<i64: 32, 1>}, {pipeline_mode = #tpu.pipeline_mode<synchronous>, transform_indices = @transform_5, window_bounds = array<i64: 64, 32>}, {pipeline_mode = #tpu.pipeline_mode<synchronous>, transform_indices = @transform_6, window_bounds = array<i64: 64, 1>}, {pipeline_mode = #tpu.pipeline_mode<synchronous>, transform_indices = @transform_7, window_bounds = array<i64: 128, 64>}, {pipeline_mode = #tpu.pipeline_mode<synchronous>, transform_indices = @transform_8, window_bounds = array<i64: 128, 1>}, {pipeline_mode = #tpu.pipeline_mode<synchronous>, transform_indices = @transform_9, window_bounds = array<i64: 128, 4>}, {pipeline_mode = #tpu.pipeline_mode<synchronous>, transform_indices = @transform_10, window_bounds = array<i64: 128, 1>}, {transform_indices = @transform_11, window_bounds = array<i64: 1, 128, 128>}]} {
    %c0 = arith.constant 0 : index
    %c0_0 = arith.constant 0 : index
    %c0_1 = arith.constant 0 : index
    %0 = vector.load %arg3[%c0, %c0_0, %c0_1] : memref<1x4x128xf32, #tpu.memory_space<vmem>>, vector<1x4x128xf32>
    %1 = vector.shape_cast %0 : vector<1x4x128xf32> to vector<4x128xf32>
    %c0_2 = arith.constant 0 : index
    %c0_3 = arith.constant 0 : index
    %2 = vector.load %arg4[%c0_2, %c0_3] : memref<32x4xf32, #tpu.memory_space<vmem>>, vector<32x4xf32>
    %cst = arith.constant dense<0.000000e+00> : vector<32x128xf32>
    %3 = tpu.matmul %2, %1, %cst {dimension_numbers = #tpu.dot_dimension_numbers<[1], [0], [0], [1], [0, 0, 1, 1], [], []>} : vector<32x4xf32>, vector<4x128xf32>, vector<32x128xf32> -> vector<32x128xf32>
    %c0_4 = arith.constant 0 : index
    %c0_5 = arith.constant 0 : index
    %4 = vector.load %arg6[%c0_4, %c0_5] : memref<32x1xf32, #tpu.memory_space<vmem>>, vector<32x1xf32>
    %5 = vector.broadcast %4 : vector<32x1xf32> to vector<32x128xf32>
    %6 = arith.addf %3, %5 : vector<32x128xf32>
    %7 = tpu.concatenate %6, %6, %6, %6, %6, %6, %6, %6 in 1 : vector<32x128xf32>, vector<32x128xf32>, vector<32x128xf32>, vector<32x128xf32>, vector<32x128xf32>, vector<32x128xf32>, vector<32x128xf32>, vector<32x128xf32> -> vector<32x1024xf32>
    %8 = tpu.concatenate %1, %1, %1, %1, %1, %1, %1, %1 in 1 : vector<4x128xf32>, vector<4x128xf32>, vector<4x128xf32>, vector<4x128xf32>, vector<4x128xf32>, vector<4x128xf32>, vector<4x128xf32>, vector<4x128xf32> -> vector<4x1024xf32>
    %c0_6 = arith.constant 0 : index
    %c0_7 = arith.constant 0 : index
    %c0_8 = arith.constant 0 : index
    %9 = vector.load %arg2[%c0_6, %c0_7, %c0_8] : memref<1x4x1024xf32, #tpu.memory_space<vmem>>, vector<1x4x1024xf32>
    %10 = vector.shape_cast %9 : vector<1x4x1024xf32> to vector<4x1024xf32>
    %11 = arith.subf %10, %8 : vector<4x1024xf32>
    %c0_9 = arith.constant 0 : index
    %c0_10 = arith.constant 0 : index
    %12 = vector.load %arg5[%c0_9, %c0_10] : memref<32x4xf32, #tpu.memory_space<vmem>>, vector<32x4xf32>
    %cst_11 = arith.constant dense<0.000000e+00> : vector<32x1024xf32>
    %13 = tpu.matmul %12, %11, %cst_11 {dimension_numbers = #tpu.dot_dimension_numbers<[1], [0], [0], [1], [0, 0, 1, 1], [], []>} : vector<32x4xf32>, vector<4x1024xf32>, vector<32x1024xf32> -> vector<32x1024xf32>
    %14 = arith.addf %13, %7 : vector<32x1024xf32>
    %cst_12 = arith.constant 0.000000e+00 : f32
    %15 = vector.broadcast %cst_12 : f32 to vector<32x1024xf32>
    %16 = arith.maximumf %14, %15 : vector<32x1024xf32>
    %c0_13 = arith.constant 0 : index
    %c0_14 = arith.constant 0 : index
    %17 = vector.load %arg7[%c0_13, %c0_14] : memref<64x32xf32, #tpu.memory_space<vmem>>, vector<64x32xf32>
    %cst_15 = arith.constant dense<0.000000e+00> : vector<64x1024xf32>
    %18 = tpu.matmul %17, %16, %cst_15 {dimension_numbers = #tpu.dot_dimension_numbers<[1], [0], [0], [1], [0, 0, 1, 1], [], []>} : vector<64x32xf32>, vector<32x1024xf32>, vector<64x1024xf32> -> vector<64x1024xf32>
    %c0_16 = arith.constant 0 : index
    %c0_17 = arith.constant 0 : index
    %19 = vector.load %arg8[%c0_16, %c0_17] : memref<64x1xf32, #tpu.memory_space<vmem>>, vector<64x1xf32>
    %20 = vector.broadcast %19 : vector<64x1xf32> to vector<64x1024xf32>
    %21 = arith.addf %18, %20 : vector<64x1024xf32>
    %cst_18 = arith.constant 0.000000e+00 : f32
    %22 = vector.broadcast %cst_18 : f32 to vector<64x1024xf32>
    %23 = arith.maximumf %21, %22 : vector<64x1024xf32>
    %c0_19 = arith.constant 0 : index
    %c0_20 = arith.constant 0 : index
    %24 = vector.load %arg9[%c0_19, %c0_20] : memref<128x64xf32, #tpu.memory_space<vmem>>, vector<128x64xf32>
    %cst_21 = arith.constant dense<0.000000e+00> : vector<128x1024xf32>
    %25 = tpu.matmul %24, %23, %cst_21 {dimension_numbers = #tpu.dot_dimension_numbers<[1], [0], [0], [1], [0, 0, 1, 1], [], []>} : vector<128x64xf32>, vector<64x1024xf32>, vector<128x1024xf32> -> vector<128x1024xf32>
    %c0_22 = arith.constant 0 : index
    %c0_23 = arith.constant 0 : index
    %26 = vector.load %arg10[%c0_22, %c0_23] : memref<128x1xf32, #tpu.memory_space<vmem>>, vector<128x1xf32>
    %27 = vector.broadcast %26 : vector<128x1xf32> to vector<128x1024xf32>
    %28 = arith.addf %25, %27 : vector<128x1024xf32>
    %cst_24 = arith.constant 0.000000e+00 : f32
    %29 = vector.broadcast %cst_24 : f32 to vector<128x1024xf32>
    %30 = arith.maximumf %28, %29 : vector<128x1024xf32>
    %31 = vector.extract_strided_slice %30 {offsets = [0, 0], sizes = [128, 128], strides = [1, 1]} : vector<128x1024xf32> to vector<128x128xf32>
    %32 = vector.extract_strided_slice %30 {offsets = [0, 128], sizes = [128, 128], strides = [1, 1]} : vector<128x1024xf32> to vector<128x128xf32>
    %33 = arith.addf %31, %32 : vector<128x128xf32>
    %34 = vector.extract_strided_slice %30 {offsets = [0, 256], sizes = [128, 128], strides = [1, 1]} : vector<128x1024xf32> to vector<128x128xf32>
    %35 = arith.addf %33, %34 : vector<128x128xf32>
    %36 = vector.extract_strided_slice %30 {offsets = [0, 384], sizes = [128, 128], strides = [1, 1]} : vector<128x1024xf32> to vector<128x128xf32>
    %37 = arith.addf %35, %36 : vector<128x128xf32>
    %38 = vector.extract_strided_slice %30 {offsets = [0, 512], sizes = [128, 128], strides = [1, 1]} : vector<128x1024xf32> to vector<128x128xf32>
    %39 = arith.addf %37, %38 : vector<128x128xf32>
    %40 = vector.extract_strided_slice %30 {offsets = [0, 640], sizes = [128, 128], strides = [1, 1]} : vector<128x1024xf32> to vector<128x128xf32>
    %41 = arith.addf %39, %40 : vector<128x128xf32>
    %42 = vector.extract_strided_slice %30 {offsets = [0, 768], sizes = [128, 128], strides = [1, 1]} : vector<128x1024xf32> to vector<128x128xf32>
    %43 = arith.addf %41, %42 : vector<128x128xf32>
    %44 = vector.extract_strided_slice %30 {offsets = [0, 896], sizes = [128, 128], strides = [1, 1]} : vector<128x1024xf32> to vector<128x128xf32>
    %45 = arith.addf %43, %44 : vector<128x128xf32>
    %cst_25 = arith.constant 1.250000e-01 : f32
    %46 = vector.broadcast %cst_25 : f32 to vector<128x128xf32>
    %47 = arith.mulf %45, %46 : vector<128x128xf32>
    %c0_26 = arith.constant 0 : index
    %c0_27 = arith.constant 0 : index
    %48 = vector.load %arg11[%c0_26, %c0_27] : memref<128x4xf32, #tpu.memory_space<vmem>>, vector<128x4xf32>
    %cst_28 = arith.constant dense<0.000000e+00> : vector<128x128xf32>
    %49 = tpu.matmul %48, %1, %cst_28 {dimension_numbers = #tpu.dot_dimension_numbers<[1], [0], [0], [1], [0, 0, 1, 1], [], []>} : vector<128x4xf32>, vector<4x128xf32>, vector<128x128xf32> -> vector<128x128xf32>
    %c0_29 = arith.constant 0 : index
    %c0_30 = arith.constant 0 : index
    %50 = vector.load %arg12[%c0_29, %c0_30] : memref<128x1xf32, #tpu.memory_space<vmem>>, vector<128x1xf32>
    %51 = vector.broadcast %50 : vector<128x1xf32> to vector<128x128xf32>
    %52 = arith.addf %49, %51 : vector<128x128xf32>
    %53 = arith.addf %52, %47 : vector<128x128xf32>
    %cst_31 = arith.constant 0.000000e+00 : f32
    %54 = vector.broadcast %cst_31 : f32 to vector<128x128xf32>
    %55 = arith.maximumf %53, %54 : vector<128x128xf32>
    %c0_32 = arith.constant 0 : index
    %c0_33 = arith.constant 0 : index
    %c0_34 = arith.constant 0 : index
    %56 = vector.load %arg13[%c0_32, %c0_33, %c0_34] : memref<1x128x128xf32, #tpu.memory_space<vmem>>, vector<1x128x128xf32>
    %57 = vector.shape_cast %56 : vector<1x128x128xf32> to vector<128x128xf32>
    %58 = vector.shape_cast %55 : vector<128x128xf32> to vector<1x128x128xf32>
    tpu.vector_store %arg13[%c0_32, %c0_33, %c0_34], %58 {strides = array<i32>} : memref<1x128x128xf32, #tpu.memory_space<vmem>>, vector<1x128x128xf32>,
    return
  }
  func.func @transform_0(%arg0: i32, %arg1: i32) -> (i32, i32, i32) {
    %c0_i32 = arith.constant 0 : i32
    %c0_i32_0 = arith.constant 0 : i32
    return %arg0, %c0_i32, %arg1 : i32, i32, i32
  }
  func.func @transform_1(%arg0: i32, %arg1: i32) -> (i32, i32, i32) {
    %c0_i32 = arith.constant 0 : i32
    %c0_i32_0 = arith.constant 0 : i32
    return %arg0, %c0_i32, %arg1 : i32, i32, i32
  }
  func.func @transform_2(%arg0: i32, %arg1: i32) -> (i32, i32) {
    %c0_i32 = arith.constant 0 : i32
    %c0_i32_0 = arith.constant 0 : i32
    %c0_i32_1 = arith.constant 0 : i32
    return %c0_i32, %c0_i32_0 : i32, i32
  }
  func.func @transform_3(%arg0: i32, %arg1: i32) -> (i32, i32) {
    %c0_i32 = arith.constant 0 : i32
    %c0_i32_0 = arith.constant 0 : i32
    %c0_i32_1 = arith.constant 0 : i32
    return %c0_i32, %c0_i32_0 : i32, i32
  }
  func.func @transform_4(%arg0: i32, %arg1: i32) -> (i32, i32) {
    %c0_i32 = arith.constant 0 : i32
    %c0_i32_0 = arith.constant 0 : i32
    %c0_i32_1 = arith.constant 0 : i32
    return %c0_i32, %c0_i32_0 : i32, i32
  }
  func.func @transform_5(%arg0: i32, %arg1: i32) -> (i32, i32) {
    %c0_i32 = arith.constant 0 : i32
    %c0_i32_0 = arith.constant 0 : i32
    %c0_i32_1 = arith.constant 0 : i32
    return %c0_i32, %c0_i32_0 : i32, i32
  }
  func.func @transform_6(%arg0: i32, %arg1: i32) -> (i32, i32) {
    %c0_i32 = arith.constant 0 : i32
    %c0_i32_0 = arith.constant 0 : i32
    %c0_i32_1 = arith.constant 0 : i32
    return %c0_i32, %c0_i32_0 : i32, i32
  }
  func.func @transform_7(%arg0: i32, %arg1: i32) -> (i32, i32) {
    %c0_i32 = arith.constant 0 : i32
    %c0_i32_0 = arith.constant 0 : i32
    %c0_i32_1 = arith.constant 0 : i32
    return %c0_i32, %c0_i32_0 : i32, i32
  }
  func.func @transform_8(%arg0: i32, %arg1: i32) -> (i32, i32) {
    %c0_i32 = arith.constant 0 : i32
    %c0_i32_0 = arith.constant 0 : i32
    %c0_i32_1 = arith.constant 0 : i32
    return %c0_i32, %c0_i32_0 : i32, i32
  }
  func.func @transform_9(%arg0: i32, %arg1: i32) -> (i32, i32) {
    %c0_i32 = arith.constant 0 : i32
    %c0_i32_0 = arith.constant 0 : i32
    %c0_i32_1 = arith.constant 0 : i32
    return %c0_i32, %c0_i32_0 : i32, i32
  }
  func.func @transform_10(%arg0: i32, %arg1: i32) -> (i32, i32) {
    %c0_i32 = arith.constant 0 : i32
    %c0_i32_0 = arith.constant 0 : i32
    %c0_i32_1 = arith.constant 0 : i32
    return %c0_i32, %c0_i32_0 : i32, i32
  }
  func.func @transform_11(%arg0: i32, %arg1: i32) -> (i32, i32, i32) {
    %c0_i32 = arith.constant 0 : i32
    %c0_i32_0 = arith.constant 0 : i32
    return %arg0, %c0_i32, %arg1 : i32, i32, i32
  }
}

</mosaic_0001>

<llo_original>
// kernel: tpu_custom_call.1
$region0: #{tpu_custom_call.1}
  #allocation0 [shape = 'u32[]', space=smem, size = 0x4, offset = 0x4, fixed_abs, tag = 'smem constant byte address 0x4 - core index']
  #allocation1 [shape = 'u32[144,128]{1,0:T(1,128)}', space=vmem, size = 0x12000, scoped, tag = 'internal scratch']
  %s0 = inlined_call_operand.vmem [shape: f32[2,4,1024], index: 0, kind: input, shape index: {}]
  %s1 = inlined_call_operand.vmem [shape: f32[2,4,128], index: 1, kind: input, shape index: {}]
  %s2 = inlined_call_operand.vmem [shape: f32[32,4], index: 2, kind: input, shape index: {}]
  %s3 = inlined_call_operand.vmem [shape: f32[32,4], index: 3, kind: input, shape index: {}]
  %s4 = inlined_call_operand.vmem [shape: f32[32,1], index: 4, kind: input, shape index: {}]
  %s5 = inlined_call_operand.vmem [shape: f32[64,32], index: 5, kind: input, shape index: {}]
  %s6 = inlined_call_operand.vmem [shape: f32[64,1], index: 6, kind: input, shape index: {}]
  %s7 = inlined_call_operand.vmem [shape: f32[128,64], index: 7, kind: input, shape index: {}]
  %s8 = inlined_call_operand.vmem [shape: f32[128,1], index: 8, kind: input, shape index: {}]
  %s9 = inlined_call_operand.vmem [shape: f32[128,4], index: 9, kind: input, shape index: {}]
  %s10 = inlined_call_operand.vmem [shape: f32[128,1], index: 10, kind: input, shape index: {}]
  %s11 = inlined_call_operand.hbm [shape: f32[2,128,128], index: 11, kind: output, shape index: {}]
  %s12 = sld [smem:[#allocation0]]
  $region77: #{tpu_custom_call.1} parent=0
    _
  %s14 = ssub.s32 1, %s12
  %s15 = scalar_select 0, %s14, %s12
  $region1: #{tpu_custom_call.1} parent=0
    #allocation2 [shape = 'u8[131072]{0}', space=vmem, size = 0x20000, scoped, tag = 'output window, operand 0']
    #allocation3 [shape = 's32[2]{0}', space=sflag, size = 0x8, scoped, tag = 'scoped memory for tpu_custom_call.1']
    %16 = vsyncpa [#allocation3], 0
    %s17 = scalar_lea.sflag [#allocation3], 1
    %18 = vsyncpa %s17, 0
    loop: start=0, step=1, limit=4
    $region2: #{tpu_custom_call.1} parent=1 // loop_pre_header
      _
    $region3: #{tpu_custom_call.1} parent=1 // loop_header
      %s20 = sphi 0, %s24
      %p21 = scmp.ge.s32.totalorder %s20, 4
      %s27 = sphi 0, %s39
      %s28 = sphi 0, %s35
      %s29 = sphi 0, %s27
      %s30 = sphi 0, %s28
      %s31 = sphi 0, %s29
      %s32 = sphi 0, %s30
      %s44 = sphi 0, %s46
      %s47 = sphi 0, %s44
      %s48 = sphi 0, %s47
      %s64 = sphi 0, %s48
      %s72 = sphi 0, %s74
      %s75 = sphi 0, %s72
      %s76 = sphi 0, %s75
      %s92 = sphi 0, %s76
      %s96 = sphi 0, %s96
      %s98 = sphi 0, %s96
      %s99 = sphi 0, %s98
      %s113 = sphi 0, %s99
      %s117 = sphi 0, %s117
      %s119 = sphi 0, %s117
      %s120 = sphi 0, %s119
      %s134 = sphi 0, %s120
      %s138 = sphi 0, %s138
      %s140 = sphi 0, %s138
      %s141 = sphi 0, %s140
      %s155 = sphi 0, %s141
      %s159 = sphi 0, %s159
      %s161 = sphi 0, %s159
      %s162 = sphi 0, %s161
      %s176 = sphi 0, %s162
      %s180 = sphi 0, %s180
      %s182 = sphi 0, %s180
      %s183 = sphi 0, %s182
      %s197 = sphi 0, %s183
      %s201 = sphi 0, %s201
      %s203 = sphi 0, %s201
      %s204 = sphi 0, %s203
      %s218 = sphi 0, %s204
      %s222 = sphi 0, %s222
      %s224 = sphi 0, %s222
      %s225 = sphi 0, %s224
      %s239 = sphi 0, %s225
      %s243 = sphi 0, %s243
      %s245 = sphi 0, %s243
      %s246 = sphi 0, %s245
      %s260 = sphi 0, %s246
      %s264 = sphi 0, %s264
      %s266 = sphi 0, %s264
      %s267 = sphi 0, %s266
      %s281 = sphi 0, %s267
      %s289 = sphi 0, %s291
      %s292 = sphi 0, %s289
      %s293 = sphi 0, %s292
      %s309 = sphi 0, %s293
    $region4: #{tpu_custom_call.1} parent=1 // loop_header_branch
      %23 = sbr.rel (%p21) target = $region8
    $region5: #{tpu_custom_call.1} parent=1 // loop_body
      %s25 = ssub.s32 %s20, 1
      %s26 = ssub.s32 %s20, 2
      %s33 = sadd.s32 1, %s28
      %p34 = scmp.ge.s32.totalorder %s33, 1
      %s35 = scalar_select %p34, 0, %s33
      %s36 = sadd.s32 1, %s27
      %s37 = scalar_select %p34, %s36, %s27
      %p38 = scmp.ge.s32.totalorder %s37, 2
      %s39 = scalar_select %p38, 0, %s37
      %s40 = ssub.s32 %s27, %s39
      %s41 = ssub.s32 %s28, %s35
      %s42 = sor.u32 %s40, %s41
      %p43 = scmp.eq.s32.totalorder %s42, 0
      %s45 = sadd.s32 %s44, 1
      %s46 = scalar_select %p43, %s44, %s45
      %p49 = pneg %p43
      %p50 = scmp.eq.s32.totalorder %s20, 1
      %p51 = por %p49, %p50
      %p52 = scmp.ne.s32.totalorder %s44, %s47
      %p53 = scmp.eq.s32.totalorder %s20, 0
      %p54 = por %p52, %p53
      %p55 = scmp.ne.s32.totalorder %s44, %s47
      %p56 = scmp.eq.s32.totalorder %s25, 1
      %p57 = por %p55, %p56
      %p58 = scmp.ne.s32.totalorder %s47, %s48
      %p59 = scmp.eq.s32.totalorder %s25, 0
      %p60 = por %p58, %p59
      %p61 = scmp.ne.s32.totalorder %s47, %s48
      %p62 = scmp.eq.s32.totalorder %s26, 1
      %p63 = por %p61, %p62
      %p65 = scmp.ne.s32.totalorder %s48, %s64
      %p66 = scmp.eq.s32.totalorder %s26, 0
      %p67 = por %p65, %p66
      %s68 = ssub.s32 %s27, %s39
      %s69 = ssub.s32 %s28, %s35
      %s70 = sor.u32 %s68, %s69
      %p71 = scmp.eq.s32.totalorder %s70, 0
      %s73 = sadd.s32 %s72, 1
      %s74 = scalar_select %p71, %s72, %s73
      %p77 = pneg %p71
      %p78 = scmp.eq.s32.totalorder %s20, 1
      %p79 = por %p77, %p78
      %p80 = scmp.ne.s32.totalorder %s72, %s75
      %p81 = scmp.eq.s32.totalorder %s20, 0
      %p82 = por %p80, %p81
      %p83 = scmp.ne.s32.totalorder %s72, %s75
      %p84 = scmp.eq.s32.totalorder %s25, 1
      %p85 = por %p83, %p84
      %p86 = scmp.ne.s32.totalorder %s75, %s76
      %p87 = scmp.eq.s32.totalorder %s25, 0
      %p88 = por %p86, %p87
      %p89 = scmp.ne.s32.totalorder %s75, %s76
      %p90 = scmp.eq.s32.totalorder %s26, 1
      %p91 = por %p89, %p90
      %p93 = scmp.ne.s32.totalorder %s76, %s92
      %p94 = scmp.eq.s32.totalorder %s26, 0
      %p95 = por %p93, %p94
      %s97 = sadd.s32 %s96, 1
      %p100 = scmp.eq.s32.totalorder %s20, 1
      %p101 = scmp.ne.s32.totalorder %s96, %s98
      %p102 = scmp.eq.s32.totalorder %s20, 0
      %p103 = por %p101, %p102
      %p104 = scmp.ne.s32.totalorder %s96, %s98
      %p105 = scmp.eq.s32.totalorder %s25, 1
      %p106 = por %p104, %p105
      %p107 = scmp.ne.s32.totalorder %s98, %s99
      %p108 = scmp.eq.s32.totalorder %s25, 0
      %p109 = por %p107, %p108
      %p110 = scmp.ne.s32.totalorder %s98, %s99
      %p111 = scmp.eq.s32.totalorder %s26, 1
      %p112 = por %p110, %p111
      %p114 = scmp.ne.s32.totalorder %s99, %s113
      %p115 = scmp.eq.s32.totalorder %s26, 0
      %p116 = por %p114, %p115
      %s118 = sadd.s32 %s117, 1
      %p121 = scmp.eq.s32.totalorder %s20, 1
      %p122 = scmp.ne.s32.totalorder %s117, %s119
      %p123 = scmp.eq.s32.totalorder %s20, 0
      %p124 = por %p122, %p123
      %p125 = scmp.ne.s32.totalorder %s117, %s119
      %p126 = scmp.eq.s32.totalorder %s25, 1
      %p127 = por %p125, %p126
      %p128 = scmp.ne.s32.totalorder %s119, %s120
      %p129 = scmp.eq.s32.totalorder %s25, 0
      %p130 = por %p128, %p129
      %p131 = scmp.ne.s32.totalorder %s119, %s120
      %p132 = scmp.eq.s32.totalorder %s26, 1
      %p133 = por %p131, %p132
      %p135 = scmp.ne.s32.totalorder %s120, %s134
      %p136 = scmp.eq.s32.totalorder %s26, 0
      %p137 = por %p135, %p136
      %s139 = sadd.s32 %s138, 1
      %p142 = scmp.eq.s32.totalorder %s20, 1
      %p143 = scmp.ne.s32.totalorder %s138, %s140
      %p144 = scmp.eq.s32.totalorder %s20, 0
      %p145 = por %p143, %p144
      %p146 = scmp.ne.s32.totalorder %s138, %s140
      %p147 = scmp.eq.s32.totalorder %s25, 1
      %p148 = por %p146, %p147
      %p149 = scmp.ne.s32.totalorder %s140, %s141
      %p150 = scmp.eq.s32.totalorder %s25, 0
      %p151 = por %p149, %p150
      %p152 = scmp.ne.s32.totalorder %s140, %s141
      %p153 = scmp.eq.s32.totalorder %s26, 1
      %p154 = por %p152, %p153
      %p156 = scmp.ne.s32.totalorder %s141, %s155
      %p157 = scmp.eq.s32.totalorder %s26, 0
      %p158 = por %p156, %p157
      %s160 = sadd.s32 %s159, 1
      %p163 = scmp.eq.s32.totalorder %s20, 1
      %p164 = scmp.ne.s32.totalorder %s159, %s161
      %p165 = scmp.eq.s32.totalorder %s20, 0
      %p166 = por %p164, %p165
      %p167 = scmp.ne.s32.totalorder %s159, %s161
      %p168 = scmp.eq.s32.totalorder %s25, 1
      %p169 = por %p167, %p168
      %p170 = scmp.ne.s32.totalorder %s161, %s162
      %p171 = scmp.eq.s32.totalorder %s25, 0
      %p172 = por %p170, %p171
      %p173 = scmp.ne.s32.totalorder %s161, %s162
      %p174 = scmp.eq.s32.totalorder %s26, 1
      %p175 = por %p173, %p174
      %p177 = scmp.ne.s32.totalorder %s162, %s176
      %p178 = scmp.eq.s32.totalorder %s26, 0
      %p179 = por %p177, %p178
      %s181 = sadd.s32 %s180, 1
      %p184 = scmp.eq.s32.totalorder %s20, 1
      %p185 = scmp.ne.s32.totalorder %s180, %s182
      %p186 = scmp.eq.s32.totalorder %s20, 0
      %p187 = por %p185, %p186
      %p188 = scmp.ne.s32.totalorder %s180, %s182
      %p189 = scmp.eq.s32.totalorder %s25, 1
      %p190 = por %p188, %p189
      %p191 = scmp.ne.s32.totalorder %s182, %s183
      %p192 = scmp.eq.s32.totalorder %s25, 0
      %p193 = por %p191, %p192
      %p194 = scmp.ne.s32.totalorder %s182, %s183
      %p195 = scmp.eq.s32.totalorder %s26, 1
      %p196 = por %p194, %p195
      %p198 = scmp.ne.s32.totalorder %s183, %s197
      %p199 = scmp.eq.s32.totalorder %s26, 0
      %p200 = por %p198, %p199
      %s202 = sadd.s32 %s201, 1
      %p205 = scmp.eq.s32.totalorder %s20, 1
      %p206 = scmp.ne.s32.totalorder %s201, %s203
      %p207 = scmp.eq.s32.totalorder %s20, 0
      %p208 = por %p206, %p207
      %p209 = scmp.ne.s32.totalorder %s201, %s203
      %p210 = scmp.eq.s32.totalorder %s25, 1
      %p211 = por %p209, %p210
      %p212 = scmp.ne.s32.totalorder %s203, %s204
      %p213 = scmp.eq.s32.totalorder %s25, 0
      %p214 = por %p212, %p213
      %p215 = scmp.ne.s32.totalorder %s203, %s204
      %p216 = scmp.eq.s32.totalorder %s26, 1
      %p217 = por %p215, %p216
      %p219 = scmp.ne.s32.totalorder %s204, %s218
      %p220 = scmp.eq.s32.totalorder %s26, 0
      %p221 = por %p219, %p220
      %s223 = sadd.s32 %s222, 1
      %p226 = scmp.eq.s32.totalorder %s20, 1
      %p227 = scmp.ne.s32.totalorder %s222, %s224
      %p228 = scmp.eq.s32.totalorder %s20, 0
      %p229 = por %p227, %p228
      %p230 = scmp.ne.s32.totalorder %s222, %s224
      %p231 = scmp.eq.s32.totalorder %s25, 1
      %p232 = por %p230, %p231
      %p233 = scmp.ne.s32.totalorder %s224, %s225
      %p234 = scmp.eq.s32.totalorder %s25, 0
      %p235 = por %p233, %p234
      %p236 = scmp.ne.s32.totalorder %s224, %s225
      %p237 = scmp.eq.s32.totalorder %s26, 1
      %p238 = por %p236, %p237
      %p240 = scmp.ne.s32.totalorder %s225, %s239
      %p241 = scmp.eq.s32.totalorder %s26, 0
      %p242 = por %p240, %p241
      %s244 = sadd.s32 %s243, 1
      %p247 = scmp.eq.s32.totalorder %s20, 1
      %p248 = scmp.ne.s32.totalorder %s243, %s245
      %p249 = scmp.eq.s32.totalorder %s20, 0
      %p250 = por %p248, %p249
      %p251 = scmp.ne.s32.totalorder %s243, %s245
      %p252 = scmp.eq.s32.totalorder %s25, 1
      %p253 = por %p251, %p252
      %p254 = scmp.ne.s32.totalorder %s245, %s246
      %p255 = scmp.eq.s32.totalorder %s25, 0
      %p256 = por %p254, %p255
      %p257 = scmp.ne.s32.totalorder %s245, %s246
      %p258 = scmp.eq.s32.totalorder %s26, 1
      %p259 = por %p257, %p258
      %p261 = scmp.ne.s32.totalorder %s246, %s260
      %p262 = scmp.eq.s32.totalorder %s26, 0
      %p263 = por %p261, %p262
      %s265 = sadd.s32 %s264, 1
      %p268 = scmp.eq.s32.totalorder %s20, 1
      %p269 = scmp.ne.s32.totalorder %s264, %s266
      %p270 = scmp.eq.s32.totalorder %s20, 0
      %p271 = por %p269, %p270
      %p272 = scmp.ne.s32.totalorder %s264, %s266
      %p273 = scmp.eq.s32.totalorder %s25, 1
      %p274 = por %p272, %p273
      %p275 = scmp.ne.s32.totalorder %s266, %s267
      %p276 = scmp.eq.s32.totalorder %s25, 0
      %p277 = por %p275, %p276
      %p278 = scmp.ne.s32.totalorder %s266, %s267
      %p279 = scmp.eq.s32.totalorder %s26, 1
      %p280 = por %p278, %p279
      %p282 = scmp.ne.s32.totalorder %s267, %s281
      %p283 = scmp.eq.s32.totalorder %s26, 0
      %p284 = por %p282, %p283
      %s285 = ssub.s32 %s27, %s39
      %s286 = ssub.s32 %s28, %s35
      %s287 = sor.u32 %s285, %s286
      %p288 = scmp.eq.s32.totalorder %s287, 0
      %s290 = sadd.s32 %s289, 1
      %s291 = scalar_select %p288, %s289, %s290
      %p294 = pneg %p288
      %p295 = scmp.eq.s32.totalorder %s20, 1
      %p296 = por %p294, %p295
      %p297 = scmp.ne.s32.totalorder %s289, %s292
      %p298 = scmp.eq.s32.totalorder %s20, 0
      %p299 = por %p297, %p298
      %p300 = scmp.ne.s32.totalorder %s289, %s292
      %p301 = scmp.eq.s32.totalorder %s25, 1
      %p302 = por %p300, %p301
      %p303 = scmp.ne.s32.totalorder %s292, %s293
      %p304 = scmp.eq.s32.totalorder %s25, 0
      %p305 = por %p303, %p304
      %p306 = scmp.ne.s32.totalorder %s292, %s293
      %p307 = scmp.eq.s32.totalorder %s26, 1
      %p308 = por %p306, %p307
      %p310 = scmp.ne.s32.totalorder %s293, %s309
      %p311 = scmp.eq.s32.totalorder %s26, 0
      %p312 = por %p310, %p311
      %p313 = scmp.le.s32.totalorder 1, %s20
      %p314 = scmp.lt.s32.totalorder %s20, 3
      %p315 = pnand %p313, %p314
      %p316 = pneg %p315
      // Predicated region
      $region9: #{tpu_custom_call.1} parent=5 // pred_check
        _
      $region10: #{tpu_custom_call.1} parent=5 // pred_check_branch
        %318 = sbr.rel (%p315) target = $region12
      $region11: #{tpu_custom_call.1} parent=5 // pred_region
        %s319 = ssub.s32 %s20, 1
        // Predicated region
        $region13: #{tpu_custom_call.1} parent=11 // pred_check
          %p320 = pneg %p109
        $region14: #{tpu_custom_call.1} parent=11 // pred_check_branch
          %322 = sbr.rel (%p320) target = $region16
        $region15: #{tpu_custom_call.1} parent=11 // pred_region
          _
        $region16: #{tpu_custom_call.1} parent=11 // pred_fallthru
          _
        // Predicated region
        $region17: #{tpu_custom_call.1} parent=11 // pred_check
          %p323 = pneg %p130
        $region18: #{tpu_custom_call.1} parent=11 // pred_check_branch
          %325 = sbr.rel (%p323) target = $region20
        $region19: #{tpu_custom_call.1} parent=11 // pred_region
          _
        $region20: #{tpu_custom_call.1} parent=11 // pred_fallthru
          _
        // Predicated region
        $region21: #{tpu_custom_call.1} parent=11 // pred_check
          %p326 = pneg %p151
        $region22: #{tpu_custom_call.1} parent=11 // pred_check_branch
          %328 = sbr.rel (%p326) target = $region24
        $region23: #{tpu_custom_call.1} parent=11 // pred_region
          _
        $region24: #{tpu_custom_call.1} parent=11 // pred_fallthru
          _
        // Predicated region
        $region25: #{tpu_custom_call.1} parent=11 // pred_check
          %p329 = pneg %p172
        $region26: #{tpu_custom_call.1} parent=11 // pred_check_branch
          %331 = sbr.rel (%p329) target = $region28
        $region27: #{tpu_custom_call.1} parent=11 // pred_region
          _
        $region28: #{tpu_custom_call.1} parent=11 // pred_fallthru
          _
        // Predicated region
        $region29: #{tpu_custom_call.1} parent=11 // pred_check
          %p332 = pneg %p193
        $region30: #{tpu_custom_call.1} parent=11 // pred_check_branch
          %334 = sbr.rel (%p332) target = $region32
        $region31: #{tpu_custom_call.1} parent=11 // pred_region
          _
        $region32: #{tpu_custom_call.1} parent=11 // pred_fallthru
          _
        // Predicated region
        $region33: #{tpu_custom_call.1} parent=11 // pred_check
          %p335 = pneg %p214
        $region34: #{tpu_custom_call.1} parent=11 // pred_check_branch
          %337 = sbr.rel (%p335) target = $region36
        $region35: #{tpu_custom_call.1} parent=11 // pred_region
          _
        $region36: #{tpu_custom_call.1} parent=11 // pred_fallthru
          _
        // Predicated region
        $region37: #{tpu_custom_call.1} parent=11 // pred_check
          %p338 = pneg %p235
        $region38: #{tpu_custom_call.1} parent=11 // pred_check_branch
          %340 = sbr.rel (%p338) target = $region40
        $region39: #{tpu_custom_call.1} parent=11 // pred_region
          _
        $region40: #{tpu_custom_call.1} parent=11 // pred_fallthru
          _
        // Predicated region
        $region41: #{tpu_custom_call.1} parent=11 // pred_check
          %p341 = pneg %p256
        $region42: #{tpu_custom_call.1} parent=11 // pred_check_branch
          %343 = sbr.rel (%p341) target = $region44
        $region43: #{tpu_custom_call.1} parent=11 // pred_region
          _
        $region44: #{tpu_custom_call.1} parent=11 // pred_fallthru
          _
        // Predicated region
        $region45: #{tpu_custom_call.1} parent=11 // pred_check
          %p344 = pneg %p277
        $region46: #{tpu_custom_call.1} parent=11 // pred_check_branch
          %346 = sbr.rel (%p344) target = $region48
        $region47: #{tpu_custom_call.1} parent=11 // pred_region
          _
        $region48: #{tpu_custom_call.1} parent=11 // pred_fallthru
          _
      $region12: #{tpu_custom_call.1} parent=5 // pred_fallthru
        _
      %p347 = scmp.lt.s32.totalorder %s20, 2
      // Predicated region
      $region49: #{tpu_custom_call.1} parent=5 // pred_check
        %p348 = pneg %p347
      $region50: #{tpu_custom_call.1} parent=5 // pred_check_branch
        %350 = sbr.rel (%p348) target = $region52
      $region51: #{tpu_custom_call.1} parent=5 // pred_region
        // Predicated region
        $region53: #{tpu_custom_call.1} parent=51 // pred_check
          %p351 = pneg %p54
        $region54: #{tpu_custom_call.1} parent=51 // pred_check_branch
          %353 = sbr.rel (%p351) target = $region56
        $region55: #{tpu_custom_call.1} parent=51 // pred_region
          %s354 = smul.u32 8, %s28
          %p355 = scmp.lt.s32.totalorder %s27, 1
          %s356 = scalar_select %p355, %s27, 1
          %p357 = scmp.lt.s32.totalorder %s354, 7
          %s358 = scalar_select %p357, %s354, 7
          %s359 = smul.addr %s356, 8
          %s360 = sadd.s32 %s358, %s359
          %s361 = smul.addr %s360, 4
          %s362 = scalar_lea.vmem %s0, %s361
          %s363 = smul.u32 8, %s28
        $region56: #{tpu_custom_call.1} parent=51 // pred_fallthru
          _
        // Predicated region
        $region57: #{tpu_custom_call.1} parent=51 // pred_check
          %p364 = pneg %p82
        $region58: #{tpu_custom_call.1} parent=51 // pred_check_branch
          %366 = sbr.rel (%p364) target = $region60
        $region59: #{tpu_custom_call.1} parent=51 // pred_region
          %p367 = scmp.lt.s32.totalorder %s27, 1
          %s368 = scalar_select %p367, %s27, 1
          %p369 = scmp.lt.s32.totalorder %s28, 0
          %s370 = scalar_select %p369, %s28, 0
          %s371 = sadd.s32 %s370, %s368
          %s372 = smul.addr %s371, 4
          %s373 = scalar_lea.vmem %s1, %s372
        $region60: #{tpu_custom_call.1} parent=51 // pred_fallthru
          _
      $region52: #{tpu_custom_call.1} parent=5 // pred_fallthru
        _
      %p374 = scmp.le.s32.totalorder 1, %s20
      %p375 = scmp.lt.s32.totalorder %s20, 3
      %p376 = pnand %p374, %p375
      %p377 = pneg %p376
      // Predicated region
      $region61: #{tpu_custom_call.1} parent=5 // pred_check
        _
      $region62: #{tpu_custom_call.1} parent=5 // pred_check_branch
        %379 = sbr.rel (%p376) target = $region64
      $region63: #{tpu_custom_call.1} parent=5 // pred_region
        %s380 = ssub.s32 %s20, 1
        %s381 = smul.u32 8, %s30
        %p382 = scmp.lt.s32.totalorder %s29, 1
        %s383 = scalar_select %p382, %s29, 1
        %p384 = scmp.lt.s32.totalorder %s381, 7
        %s385 = scalar_select %p384, %s381, 7
        %s386 = smul.addr %s383, 8
        %s387 = sadd.s32 %s385, %s386
        %s388 = smul.addr %s387, 4
        %s389 = scalar_lea.vmem %s0, %s388
        %p390 = pneg %p60
        %p391 = pneg %p57
        %p392 = scmp.lt.s32.totalorder %s29, 1
        %s393 = scalar_select %p392, %s29, 1
        %p394 = scmp.lt.s32.totalorder %s30, 0
        %s395 = scalar_select %p394, %s30, 0
        %s396 = sadd.s32 %s395, %s393
        %s397 = smul.addr %s396, 4
        %s398 = scalar_lea.vmem %s1, %s397
        %p399 = pneg %p88
        %p400 = pneg %p85
        %p401 = pneg %p109
        %p402 = pneg %p106
        %p403 = pneg %p130
        %p404 = pneg %p127
        %p405 = pneg %p151
        %p406 = pneg %p148
        %p407 = pneg %p172
        %p408 = pneg %p169
        %p409 = pneg %p193
        %p410 = pneg %p190
        %p411 = pneg %p214
        %p412 = pneg %p211
        %p413 = pneg %p235
        %p414 = pneg %p232
        %p415 = pneg %p256
        %p416 = pneg %p253
        %p417 = pneg %p277
        %p418 = pneg %p274
        %p419 = pneg %p305
        %p420 = pneg %p302
        %s421 = sand.u32 %s292, 1
        %s422 = scalar_lea.sflag [#allocation3], %s421
        %s423 = sand.u32 %s292, 1
        %s424 = smul.addr %s423, 128
        %s425 = scalar_lea.vmem [#allocation2], %s424
        %s426 = smul.u32 8, %s30
        %p427 = scmp.lt.s32.totalorder %s29, 1
        %s428 = scalar_select %p427, %s29, 1
        %p429 = scmp.lt.s32.totalorder %s426, 7
        %s430 = scalar_select %p429, %s426, 7
        %s431 = smul.addr %s428, 8
        %s432 = sadd.s32 %s430, %s431
        %s433 = smul.addr %s432, 4
        %s434 = scalar_lea.vmem %s0, %s433
        %s435 = smul.u32 8, %s30
        %p436 = scmp.lt.s32.totalorder %s29, 1
        %s437 = scalar_select %p436, %s29, 1
        %p438 = scmp.lt.s32.totalorder %s30, 0
        %s439 = scalar_select %p438, %s30, 0
        %s440 = sadd.s32 %s439, %s437
        %s441 = smul.addr %s440, 4
        %s442 = scalar_lea.vmem %s1, %s441
        %v443 = vld [vmem:[%s442] sm:$0xf]
        %v444 = vld [vmem:[%s2] sm:$0xff]
        %v445 = vld [vmem:[%s2 + $0x8] sm:$0xff]
        %v446 = vld [vmem:[%s2 + $0x10] sm:$0xff]
        %v447 = vld [vmem:[%s2 + $0x18] sm:$0xff]
        %v448 = vld [vmem:[%s4] sm:$0xff]
        %v449 = vld [vmem:[%s4 + $0x8] sm:$0xff]
        %v450 = vld [vmem:[%s4 + $0x10] sm:$0xff]
        %v451 = vld [vmem:[%s4 + $0x18] sm:$0xff]
        %453 = vset.pattern.permute.xlu0 0
        %454 = vperm.xlu0 %453, %v448
        %v455 = vpop.permute.xlu0 %454
        %458 = vset.pattern.permute.xlu0 0
        %459 = vperm.xlu0 %458, %v449
        %v460 = vpop.permute.xlu0 %459
        %463 = vset.pattern.permute.xlu0 0
        %464 = vperm.xlu0 %463, %v450
        %v465 = vpop.permute.xlu0 %464
        %468 = vset.pattern.permute.xlu0 0
        %469 = vperm.xlu0 %468, %v451
        %v470 = vpop.permute.xlu0 %469
        %vm472 = vcmask 31744
        %v474 = vsel %vm472, %v444, 0
        %v477 = vsel %vm472, %v445, 0
        %v480 = vsel %vm472, %v446, 0
        %v483 = vsel %vm472, %v447, 0
        %vm485 = vcmask 1043456
        %v487 = vsel %vm485, %v443, 0
        %489 = vmatprep.subr.mxu0 0.0
        %490 = vmatpush1.msra.mxu0 0.0
        %491 = vmatprep.subr.mxu0 0.0
        %492 = vmatpush1.msra.mxu0 0.0
        %493 = vmatprep.subr.mxu0 0.0
        %494 = vmatpush1.msra.mxu0 0.0
        %495 = vmatprep.subr.mxu0 0.0
        %496 = vmatpush1.msra.mxu0 0.0
        %497 = vmatprep.subr.mxu0 0.0
        %498 = vmatpush1.msra.mxu0 0.0
        %499 = vmatprep.subr.mxu0 0.0
        %500 = vmatpush1.msra.mxu0 0.0
        %501 = vmatprep.subr.mxu0 0.0
        %502 = vmatpush1.msra.mxu0 0.0
        %503 = vmatprep.subr.mxu0 0.0
        %504 = vmatpush1.msra.mxu0 0.0
        %505 = vmatprep.subr.mxu0 0.0
        %506 = vmatpush1.msra.mxu0 0.0
        %507 = vmatprep.subr.mxu0 0.0
        %508 = vmatpush1.msra.mxu0 0.0
        %509 = vmatprep.subr.mxu0 0.0
        %510 = vmatpush1.msra.mxu0 0.0
        %511 = vmatprep.subr.mxu0 0.0
        %512 = vmatpush1.msra.mxu0 0.0
        %513 = vmatprep.subr.mxu0 0.0
        %514 = vmatpush1.msra.mxu0 0.0
        %515 = vmatprep.subr.mxu0 0.0
        %516 = vmatpush1.msra.mxu0 0.0
        %517 = vmatprep.subr.mxu0 0.0
        %518 = vmatpush1.msra.mxu0 0.0
        %519 = vmatprep.subr.mxu0 0.0
        %520 = vmatpush1.msra.mxu0 %v487
        %521 = vmatprep.subr.mxu0 0.0
        %522 = vmatpush2.msra.mxu0 0.0
        %523 = vmatprep.subr.mxu0 0.0
        %524 = vmatpush2.msra.mxu0 0.0
        %525 = vmatprep.subr.mxu0 0.0
        %526 = vmatpush2.msra.mxu0 0.0
        %527 = vmatprep.subr.mxu0 0.0
        %528 = vmatpush2.msra.mxu0 0.0
        %529 = vmatprep.subr.mxu0 0.0
        %530 = vmatpush2.msra.mxu0 0.0
        %531 = vmatprep.subr.mxu0 0.0
        %532 = vmatpush2.msra.mxu0 0.0
        %533 = vmatprep.subr.mxu0 0.0
        %534 = vmatpush2.msra.mxu0 0.0
        %535 = vmatprep.subr.mxu0 0.0
        %536 = vmatpush2.msra.mxu0 0.0
        %537 = vmatprep.subr.mxu0 0.0
        %538 = vmatpush2.msra.mxu0 0.0
        %539 = vmatprep.subr.mxu0 0.0
        %540 = vmatpush2.msra.mxu0 0.0
        %541 = vmatprep.subr.mxu0 0.0
        %542 = vmatpush2.msra.mxu0 0.0
        %543 = vmatprep.subr.mxu0 0.0
        %544 = vmatpush2.msra.mxu0 0.0
        %545 = vmatprep.subr.mxu0 0.0
        %546 = vmatpush2.msra.mxu0 0.0
        %547 = vmatprep.subr.mxu0 0.0
        %548 = vmatpush2.msra.mxu0 0.0
        %549 = vmatprep.subr.mxu0 0.0
        %550 = vmatpush2.msra.mxu0 0.0
        %551 = vmatprep.subr.mxu0 0.0
        %552 = vmatpush2.msra.mxu0 0.0
        %553 = vmatprep.mubr.f32.mxu0 0.0
        %554 = vmatmul.mubr.f32.gmra.mxu0 %v474
        %v555 = vpop.f32.mrf.mxu0
        %v556 = vadd.f32 %v455, %v555
        %v557 = vpop.f32.mrf.mxu0
        %558 = vmatprep.mubr.f32.mxu0 0.0
        %559 = vmatmul.mubr.f32.gmra.mxu0 %v477
        %v560 = vpop.f32.mrf.mxu0
        %v561 = vadd.f32 %v460, %v560
        %v562 = vpop.f32.mrf.mxu0
        %563 = vmatprep.mubr.f32.mxu0 0.0
        %564 = vmatmul.mubr.f32.gmra.mxu0 %v480
        %v565 = vpop.f32.mrf.mxu0
        %v566 = vadd.f32 %v465, %v565
        %v567 = vpop.f32.mrf.mxu0
        %568 = vmatprep.mubr.f32.mxu0 0.0
        %569 = vmatmul.mubr.f32.gmra.mxu0 %v483
        %v570 = vpop.f32.mrf.mxu0
        %v571 = vadd.f32 %v470, %v570
        %v572 = vpop.f32.mrf.mxu0
        %573 = vdwg.mxu0
        %v574 = vld [vmem:[%s434] sm:$0xff]
        %v575 = vld [vmem:[%s434 + $0x8] sm:$0xff]
        %v576 = vld [vmem:[%s434 + $0x10] sm:$0xff]
        %v577 = vld [vmem:[%s434 + $0x18] sm:$0xff]
        %v578 = vcombine.low %v443, %v443
        %v580 = vsub.f32 %v574, %v578
        %v581 = vsub.f32 %v575, %v578
        %v582 = vsub.f32 %v576, %v578
        %v583 = vsub.f32 %v577, %v578
        %v584 = vld [vmem:[%s3] sm:$0xff]
        %v585 = vld [vmem:[%s3 + $0x8] sm:$0xff]
        %v586 = vld [vmem:[%s3 + $0x10] sm:$0xff]
        %v587 = vld [vmem:[%s3 + $0x18] sm:$0xff]
        %v592 = vcombine.high %v580, %v580
        %v593 = vcombine.high %v581, %v581
        %v594 = vcombine.high %v582, %v582
        %v595 = vcombine.high %v583, %v583
        %v597 = vsel %vm472, %v584, 0
        %v600 = vsel %vm472, %v585, 0
        %v603 = vsel %vm472, %v586, 0
        %v606 = vsel %vm472, %v587, 0
        %v608 = vsel %vm485, %v580, 0
        %v610 = vsel %vm485, %v592, 0
        %v612 = vsel %vm485, %v581, 0
        %v614 = vsel %vm485, %v593, 0
        %v616 = vsel %vm485, %v582, 0
        %v618 = vsel %vm485, %v594, 0
        %v620 = vsel %vm485, %v583, 0
        %v622 = vsel %vm485, %v595, 0
        %624 = vmatprep.subr.mxu0 0.0
        %625 = vmatpush1.msra.mxu0 0.0
        %626 = vmatprep.subr.mxu0 0.0
        %627 = vmatpush1.msra.mxu0 0.0
        %628 = vmatprep.subr.mxu0 0.0
        %629 = vmatpush1.msra.mxu0 0.0
        %630 = vmatprep.subr.mxu0 0.0
        %631 = vmatpush1.msra.mxu0 0.0
        %632 = vmatprep.subr.mxu0 0.0
        %633 = vmatpush1.msra.mxu0 0.0
        %634 = vmatprep.subr.mxu0 0.0
        %635 = vmatpush1.msra.mxu0 0.0
        %636 = vmatprep.subr.mxu0 0.0
        %637 = vmatpush1.msra.mxu0 0.0
        %638 = vmatprep.subr.mxu0 0.0
        %639 = vmatpush1.msra.mxu0 0.0
        %640 = vmatprep.subr.mxu0 0.0
        %641 = vmatpush1.msra.mxu0 0.0
        %642 = vmatprep.subr.mxu0 0.0
        %643 = vmatpush1.msra.mxu0 0.0
        %644 = vmatprep.subr.mxu0 0.0
        %645 = vmatpush1.msra.mxu0 0.0
        %646 = vmatprep.subr.mxu0 0.0
        %647 = vmatpush1.msra.mxu0 0.0
        %648 = vmatprep.subr.mxu0 0.0
        %649 = vmatpush1.msra.mxu0 0.0
        %650 = vmatprep.subr.mxu0 0.0
        %651 = vmatpush1.msra.mxu0 0.0
        %652 = vmatprep.subr.mxu0 0.0
        %653 = vmatpush1.msra.mxu0 0.0
        %654 = vmatprep.subr.mxu0 %v610
        %655 = vmatpush1.msra.mxu0 %v608
        %656 = vmatprep.subr.mxu0 0.0
        %657 = vmatpush2.msra.mxu0 0.0
        %658 = vmatprep.subr.mxu0 0.0
        %659 = vmatpush2.msra.mxu0 0.0
        %660 = vmatprep.subr.mxu0 0.0
        %661 = vmatpush2.msra.mxu0 0.0
        %662 = vmatprep.subr.mxu0 0.0
        %663 = vmatpush2.msra.mxu0 0.0
        %664 = vmatprep.subr.mxu0 0.0
        %665 = vmatpush2.msra.mxu0 0.0
        %666 = vmatprep.subr.mxu0 0.0
        %667 = vmatpush2.msra.mxu0 0.0
        %668 = vmatprep.subr.mxu0 0.0
        %669 = vmatpush2.msra.mxu0 0.0
        %670 = vmatprep.subr.mxu0 0.0
        %671 = vmatpush2.msra.mxu0 0.0
        %672 = vmatprep.subr.mxu0 0.0
        %673 = vmatpush2.msra.mxu0 0.0
        %674 = vmatprep.subr.mxu0 0.0
        %675 = vmatpush2.msra.mxu0 0.0
        %676 = vmatprep.subr.mxu0 0.0
        %677 = vmatpush2.msra.mxu0 0.0
        %678 = vmatprep.subr.mxu0 0.0
        %679 = vmatpush2.msra.mxu0 0.0
        %680 = vmatprep.subr.mxu0 0.0
        %681 = vmatpush2.msra.mxu0 0.0
        %682 = vmatprep.subr.mxu0 0.0
        %683 = vmatpush2.msra.mxu0 0.0
        %684 = vmatprep.subr.mxu0 0.0
        %685 = vmatpush2.msra.mxu0 0.0
        %686 = vmatprep.subr.mxu0 0.0
        %687 = vmatpush2.msra.mxu0 0.0
        %688 = vmatprep.mubr.f32.mxu0 0.0
        %689 = vmatmul.mubr.f32.gmra.mxu0 %v597
        %v690 = vpop.f32.mrf.mxu0
        %v691 = vadd.f32 %v556, %v690
        %v692 = vpop.f32.mrf.mxu0
        %v693 = vadd.f32 %v556, %v692
        %694 = vmatprep.mubr.f32.mxu0 0.0
        %695 = vmatmul.mubr.f32.gmra.mxu0 %v600
        %v696 = vpop.f32.mrf.mxu0
        %v697 = vadd.f32 %v561, %v696
        %v698 = vpop.f32.mrf.mxu0
        %v699 = vadd.f32 %v561, %v698
        %700 = vmatprep.mubr.f32.mxu0 0.0
        %701 = vmatmul.mubr.f32.gmra.mxu0 %v603
        %v702 = vpop.f32.mrf.mxu0
        %v703 = vadd.f32 %v566, %v702
        %v704 = vpop.f32.mrf.mxu0
        %v705 = vadd.f32 %v566, %v704
        %706 = vmatprep.mubr.f32.mxu0 0.0
        %707 = vmatmul.mubr.f32.gmra.mxu0 %v606
        %v708 = vpop.f32.mrf.mxu0
        %v709 = vadd.f32 %v571, %v708
        %v710 = vpop.f32.mrf.mxu0
        %v711 = vadd.f32 %v571, %v710
        %712 = vdwg.mxu0
        %713 = vmatprep.subr.mxu0 0.0
        %714 = vmatpush1.msra.mxu0 0.0
        %715 = vmatprep.subr.mxu0 0.0
        %716 = vmatpush1.msra.mxu0 0.0
        %717 = vmatprep.subr.mxu0 0.0
        %718 = vmatpush1.msra.mxu0 0.0
        %719 = vmatprep.subr.mxu0 0.0
        %720 = vmatpush1.msra.mxu0 0.0
        %721 = vmatprep.subr.mxu0 0.0
        %722 = vmatpush1.msra.mxu0 0.0
        %723 = vmatprep.subr.mxu0 0.0
        %724 = vmatpush1.msra.mxu0 0.0
        %725 = vmatprep.subr.mxu0 0.0
        %726 = vmatpush1.msra.mxu0 0.0
        %727 = vmatprep.subr.mxu0 0.0
        %728 = vmatpush1.msra.mxu0 0.0
        %729 = vmatprep.subr.mxu0 0.0
        %730 = vmatpush1.msra.mxu0 0.0
        %731 = vmatprep.subr.mxu0 0.0
        %732 = vmatpush1.msra.mxu0 0.0
        %733 = vmatprep.subr.mxu0 0.0
        %734 = vmatpush1.msra.mxu0 0.0
        %735 = vmatprep.subr.mxu0 0.0
        %736 = vmatpush1.msra.mxu0 0.0
        %737 = vmatprep.subr.mxu0 0.0
        %738 = vmatpush1.msra.mxu0 0.0
        %739 = vmatprep.subr.mxu0 0.0
        %740 = vmatpush1.msra.mxu0 0.0
        %741 = vmatprep.subr.mxu0 0.0
        %742 = vmatpush1.msra.mxu0 0.0
        %743 = vmatprep.subr.mxu0 %v614
        %744 = vmatpush1.msra.mxu0 %v612
        %745 = vmatprep.subr.mxu0 0.0
        %746 = vmatpush2.msra.mxu0 0.0
        %747 = vmatprep.subr.mxu0 0.0
        %748 = vmatpush2.msra.mxu0 0.0
        %749 = vmatprep.subr.mxu0 0.0
        %750 = vmatpush2.msra.mxu0 0.0
        %751 = vmatprep.subr.mxu0 0.0
        %752 = vmatpush2.msra.mxu0 0.0
        %753 = vmatprep.subr.mxu0 0.0
        %754 = vmatpush2.msra.mxu0 0.0
        %755 = vmatprep.subr.mxu0 0.0
        %756 = vmatpush2.msra.mxu0 0.0
        %757 = vmatprep.subr.mxu0 0.0
        %758 = vmatpush2.msra.mxu0 0.0
        %759 = vmatprep.subr.mxu0 0.0
        %760 = vmatpush2.msra.mxu0 0.0
        %761 = vmatprep.subr.mxu0 0.0
        %762 = vmatpush2.msra.mxu0 0.0
        %763 = vmatprep.subr.mxu0 0.0
        %764 = vmatpush2.msra.mxu0 0.0
        %765 = vmatprep.subr.mxu0 0.0
        %766 = vmatpush2.msra.mxu0 0.0
        %767 = vmatprep.subr.mxu0 0.0
        %768 = vmatpush2.msra.mxu0 0.0
        %769 = vmatprep.subr.mxu0 0.0
        %770 = vmatpush2.msra.mxu0 0.0
        %771 = vmatprep.subr.mxu0 0.0
        %772 = vmatpush2.msra.mxu0 0.0
        %773 = vmatprep.subr.mxu0 0.0
        %774 = vmatpush2.msra.mxu0 0.0
        %775 = vmatprep.subr.mxu0 0.0
        %776 = vmatpush2.msra.mxu0 0.0
        %777 = vmatprep.mubr.f32.mxu0 0.0
        %778 = vmatmul.mubr.f32.gmra.mxu0 %v597
        %v779 = vpop.f32.mrf.mxu0
        %v780 = vadd.f32 %v556, %v779
        %v781 = vpop.f32.mrf.mxu0
        %v782 = vadd.f32 %v556, %v781
        %783 = vmatprep.mubr.f32.mxu0 0.0
        %784 = vmatmul.mubr.f32.gmra.mxu0 %v600
        %v785 = vpop.f32.mrf.mxu0
        %v786 = vadd.f32 %v561, %v785
        %v787 = vpop.f32.mrf.mxu0
        %v788 = vadd.f32 %v561, %v787
        %789 = vmatprep.mubr.f32.mxu0 0.0
        %790 = vmatmul.mubr.f32.gmra.mxu0 %v603
        %v791 = vpop.f32.mrf.mxu0
        %v792 = vadd.f32 %v566, %v791
        %v793 = vpop.f32.mrf.mxu0
        %v794 = vadd.f32 %v566, %v793
        %795 = vmatprep.mubr.f32.mxu0 0.0
        %796 = vmatmul.mubr.f32.gmra.mxu0 %v606
        %v797 = vpop.f32.mrf.mxu0
        %v798 = vadd.f32 %v571, %v797
        %v799 = vpop.f32.mrf.mxu0
        %v800 = vadd.f32 %v571, %v799
        %801 = vdwg.mxu0
        %802 = vmatprep.subr.mxu0 0.0
        %803 = vmatpush1.msra.mxu0 0.0
        %804 = vmatprep.subr.mxu0 0.0
        %805 = vmatpush1.msra.mxu0 0.0
        %806 = vmatprep.subr.mxu0 0.0
        %807 = vmatpush1.msra.mxu0 0.0
        %808 = vmatprep.subr.mxu0 0.0
        %809 = vmatpush1.msra.mxu0 0.0
        %810 = vmatprep.subr.mxu0 0.0
        %811 = vmatpush1.msra.mxu0 0.0
        %812 = vmatprep.subr.mxu0 0.0
        %813 = vmatpush1.msra.mxu0 0.0
        %814 = vmatprep.subr.mxu0 0.0
        %815 = vmatpush1.msra.mxu0 0.0
        %816 = vmatprep.subr.mxu0 0.0
        %817 = vmatpush1.msra.mxu0 0.0
        %818 = vmatprep.subr.mxu0 0.0
        %819 = vmatpush1.msra.mxu0 0.0
        %820 = vmatprep.subr.mxu0 0.0
        %821 = vmatpush1.msra.mxu0 0.0
        %822 = vmatprep.subr.mxu0 0.0
        %823 = vmatpush1.msra.mxu0 0.0
        %824 = vmatprep.subr.mxu0 0.0
        %825 = vmatpush1.msra.mxu0 0.0
        %826 = vmatprep.subr.mxu0 0.0
        %827 = vmatpush1.msra.mxu0 0.0
        %828 = vmatprep.subr.mxu0 0.0
        %829 = vmatpush1.msra.mxu0 0.0
        %830 = vmatprep.subr.mxu0 0.0
        %831 = vmatpush1.msra.mxu0 0.0
        %832 = vmatprep.subr.mxu0 %v618
        %833 = vmatpush1.msra.mxu0 %v616
        %834 = vmatprep.subr.mxu0 0.0
        %835 = vmatpush2.msra.mxu0 0.0
        %836 = vmatprep.subr.mxu0 0.0
        %837 = vmatpush2.msra.mxu0 0.0
        %838 = vmatprep.subr.mxu0 0.0
        %839 = vmatpush2.msra.mxu0 0.0
        %840 = vmatprep.subr.mxu0 0.0
        %841 = vmatpush2.msra.mxu0 0.0
        %842 = vmatprep.subr.mxu0 0.0
        %843 = vmatpush2.msra.mxu0 0.0
        %844 = vmatprep.subr.mxu0 0.0
        %845 = vmatpush2.msra.mxu0 0.0
        %846 = vmatprep.subr.mxu0 0.0
        %847 = vmatpush2.msra.mxu0 0.0
        %848 = vmatprep.subr.mxu0 0.0
        %849 = vmatpush2.msra.mxu0 0.0
        %850 = vmatprep.subr.mxu0 0.0
        %851 = vmatpush2.msra.mxu0 0.0
        %852 = vmatprep.subr.mxu0 0.0
        %853 = vmatpush2.msra.mxu0 0.0
        %854 = vmatprep.subr.mxu0 0.0
        %855 = vmatpush2.msra.mxu0 0.0
        %856 = vmatprep.subr.mxu0 0.0
        %857 = vmatpush2.msra.mxu0 0.0
        %858 = vmatprep.subr.mxu0 0.0
        %859 = vmatpush2.msra.mxu0 0.0
        %860 = vmatprep.subr.mxu0 0.0
        %861 = vmatpush2.msra.mxu0 0.0
        %862 = vmatprep.subr.mxu0 0.0
        %863 = vmatpush2.msra.mxu0 0.0
        %864 = vmatprep.subr.mxu0 0.0
        %865 = vmatpush2.msra.mxu0 0.0
        %866 = vmatprep.mubr.f32.mxu0 0.0
        %867 = vmatmul.mubr.f32.gmra.mxu0 %v597
        %v868 = vpop.f32.mrf.mxu0
        %v869 = vadd.f32 %v556, %v868
        %v870 = vpop.f32.mrf.mxu0
        %v871 = vadd.f32 %v556, %v870
        %872 = vmatprep.mubr.f32.mxu0 0.0
        %873 = vmatmul.mubr.f32.gmra.mxu0 %v600
        %v874 = vpop.f32.mrf.mxu0
        %v875 = vadd.f32 %v561, %v874
        %v876 = vpop.f32.mrf.mxu0
        %v877 = vadd.f32 %v561, %v876
        %878 = vmatprep.mubr.f32.mxu0 0.0
        %879 = vmatmul.mubr.f32.gmra.mxu0 %v603
        %v880 = vpop.f32.mrf.mxu0
        %v881 = vadd.f32 %v566, %v880
        %v882 = vpop.f32.mrf.mxu0
        %v883 = vadd.f32 %v566, %v882
        %884 = vmatprep.mubr.f32.mxu0 0.0
        %885 = vmatmul.mubr.f32.gmra.mxu0 %v606
        %v886 = vpop.f32.mrf.mxu0
        %v887 = vadd.f32 %v571, %v886
        %v888 = vpop.f32.mrf.mxu0
        %v889 = vadd.f32 %v571, %v888
        %890 = vdwg.mxu0
        %891 = vmatprep.subr.mxu0 0.0
        %892 = vmatpush1.msra.mxu0 0.0
        %893 = vmatprep.subr.mxu0 0.0
        %894 = vmatpush1.msra.mxu0 0.0
        %895 = vmatprep.subr.mxu0 0.0
        %896 = vmatpush1.msra.mxu0 0.0
        %897 = vmatprep.subr.mxu0 0.0
        %898 = vmatpush1.msra.mxu0 0.0
        %899 = vmatprep.subr.mxu0 0.0
        %900 = vmatpush1.msra.mxu0 0.0
        %901 = vmatprep.subr.mxu0 0.0
        %902 = vmatpush1.msra.mxu0 0.0
        %903 = vmatprep.subr.mxu0 0.0
        %904 = vmatpush1.msra.mxu0 0.0
        %905 = vmatprep.subr.mxu0 0.0
        %906 = vmatpush1.msra.mxu0 0.0
        %907 = vmatprep.subr.mxu0 0.0
        %908 = vmatpush1.msra.mxu0 0.0
        %909 = vmatprep.subr.mxu0 0.0
        %910 = vmatpush1.msra.mxu0 0.0
        %911 = vmatprep.subr.mxu0 0.0
        %912 = vmatpush1.msra.mxu0 0.0
        %913 = vmatprep.subr.mxu0 0.0
        %914 = vmatpush1.msra.mxu0 0.0
        %915 = vmatprep.subr.mxu0 0.0
        %916 = vmatpush1.msra.mxu0 0.0
        %917 = vmatprep.subr.mxu0 0.0
        %918 = vmatpush1.msra.mxu0 0.0
        %919 = vmatprep.subr.mxu0 0.0
        %920 = vmatpush1.msra.mxu0 0.0
        %921 = vmatprep.subr.mxu0 %v622
        %922 = vmatpush1.msra.mxu0 %v620
        %923 = vmatprep.subr.mxu0 0.0
        %924 = vmatpush2.msra.mxu0 0.0
        %925 = vmatprep.subr.mxu0 0.0
        %926 = vmatpush2.msra.mxu0 0.0
        %927 = vmatprep.subr.mxu0 0.0
        %928 = vmatpush2.msra.mxu0 0.0
        %929 = vmatprep.subr.mxu0 0.0
        %930 = vmatpush2.msra.mxu0 0.0
        %931 = vmatprep.subr.mxu0 0.0
        %932 = vmatpush2.msra.mxu0 0.0
        %933 = vmatprep.subr.mxu0 0.0
        %934 = vmatpush2.msra.mxu0 0.0
        %935 = vmatprep.subr.mxu0 0.0
        %936 = vmatpush2.msra.mxu0 0.0
        %937 = vmatprep.subr.mxu0 0.0
        %938 = vmatpush2.msra.mxu0 0.0
        %939 = vmatprep.subr.mxu0 0.0
        %940 = vmatpush2.msra.mxu0 0.0
        %941 = vmatprep.subr.mxu0 0.0
        %942 = vmatpush2.msra.mxu0 0.0
        %943 = vmatprep.subr.mxu0 0.0
        %944 = vmatpush2.msra.mxu0 0.0
        %945 = vmatprep.subr.mxu0 0.0
        %946 = vmatpush2.msra.mxu0 0.0
        %947 = vmatprep.subr.mxu0 0.0
        %948 = vmatpush2.msra.mxu0 0.0
        %949 = vmatprep.subr.mxu0 0.0
        %950 = vmatpush2.msra.mxu0 0.0
        %951 = vmatprep.subr.mxu0 0.0
        %952 = vmatpush2.msra.mxu0 0.0
        %953 = vmatprep.subr.mxu0 0.0
        %954 = vmatpush2.msra.mxu0 0.0
        %955 = vmatprep.mubr.f32.mxu0 0.0
        %956 = vmatmul.mubr.f32.gmra.mxu0 %v597
        %v957 = vpop.f32.mrf.mxu0
        %v958 = vadd.f32 %v556, %v957
        %v959 = vpop.f32.mrf.mxu0
        %v960 = vadd.f32 %v556, %v959
        %961 = vmatprep.mubr.f32.mxu0 0.0
        %962 = vmatmul.mubr.f32.gmra.mxu0 %v600
        %v963 = vpop.f32.mrf.mxu0
        %v964 = vadd.f32 %v561, %v963
        %v965 = vpop.f32.mrf.mxu0
        %v966 = vadd.f32 %v561, %v965
        %967 = vmatprep.mubr.f32.mxu0 0.0
        %968 = vmatmul.mubr.f32.gmra.mxu0 %v603
        %v969 = vpop.f32.mrf.mxu0
        %v970 = vadd.f32 %v566, %v969
        %v971 = vpop.f32.mrf.mxu0
        %v972 = vadd.f32 %v566, %v971
        %973 = vmatprep.mubr.f32.mxu0 0.0
        %974 = vmatmul.mubr.f32.gmra.mxu0 %v606
        %v975 = vpop.f32.mrf.mxu0
        %v976 = vadd.f32 %v571, %v975
        %v977 = vpop.f32.mrf.mxu0
        %v978 = vadd.f32 %v571, %v977
        %979 = vdwg.mxu0
        %v980 = vmax.f32 %v691, 0.0
        %v981 = vmax.f32 %v693, 0.0
        %v982 = vmax.f32 %v780, 0.0
        %v983 = vmax.f32 %v782, 0.0
        %v984 = vmax.f32 %v869, 0.0
        %v985 = vmax.f32 %v871, 0.0
        %v986 = vmax.f32 %v958, 0.0
        %v987 = vmax.f32 %v960, 0.0
        %v988 = vmax.f32 %v697, 0.0
        %v989 = vmax.f32 %v699, 0.0
        %v990 = vmax.f32 %v786, 0.0
        %v991 = vmax.f32 %v788, 0.0
        %v992 = vmax.f32 %v875, 0.0
        %v993 = vmax.f32 %v877, 0.0
        %v994 = vmax.f32 %v964, 0.0
        %v995 = vmax.f32 %v966, 0.0
        %v996 = vmax.f32 %v703, 0.0
        %v997 = vmax.f32 %v705, 0.0
        %v998 = vmax.f32 %v792, 0.0
        %v999 = vmax.f32 %v794, 0.0
        %v1000 = vmax.f32 %v881, 0.0
        %v1001 = vmax.f32 %v883, 0.0
        %v1002 = vmax.f32 %v970, 0.0
        %v1003 = vmax.f32 %v972, 0.0
        %v1004 = vmax.f32 %v709, 0.0
        %v1005 = vmax.f32 %v711, 0.0
        %v1006 = vmax.f32 %v798, 0.0
        %v1007 = vmax.f32 %v800, 0.0
        %v1008 = vmax.f32 %v887, 0.0
        %v1009 = vmax.f32 %v889, 0.0
        %v1010 = vmax.f32 %v976, 0.0
        %v1011 = vmax.f32 %v978, 0.0
        %v1012 = vld [vmem:[%s5] sm:$0xff]
        %v1013 = vld [vmem:[%s5 + $0x8] sm:$0xff]
        %v1014 = vld [vmem:[%s5 + $0x10] sm:$0xff]
        %v1015 = vld [vmem:[%s5 + $0x18] sm:$0xff]
        %v1016 = vld [vmem:[%s5 + $0x20] sm:$0xff]
        %v1017 = vld [vmem:[%s5 + $0x28] sm:$0xff]
        %v1018 = vld [vmem:[%s5 + $0x30] sm:$0xff]
        %v1019 = vld [vmem:[%s5 + $0x38] sm:$0xff]
        %v1020 = vld [vmem:[%s6] sm:$0xff]
        %v1021 = vld [vmem:[%s6 + $0x8] sm:$0xff]
        %v1022 = vld [vmem:[%s6 + $0x10] sm:$0xff]
        %v1023 = vld [vmem:[%s6 + $0x18] sm:$0xff]
        %v1024 = vld [vmem:[%s6 + $0x20] sm:$0xff]
        %v1025 = vld [vmem:[%s6 + $0x28] sm:$0xff]
        %v1026 = vld [vmem:[%s6 + $0x30] sm:$0xff]
        %v1027 = vld [vmem:[%s6 + $0x38] sm:$0xff]
        %1029 = vset.pattern.permute.xlu0 0
        %1030 = vperm.xlu0 %1029, %v1020
        %v1031 = vpop.permute.xlu0 %1030
        %1034 = vset.pattern.permute.xlu0 0
        %1035 = vperm.xlu0 %1034, %v1021
        %v1036 = vpop.permute.xlu0 %1035
        %1039 = vset.pattern.permute.xlu0 0
        %1040 = vperm.xlu0 %1039, %v1022
        %v1041 = vpop.permute.xlu0 %1040
        %1044 = vset.pattern.permute.xlu0 0
        %1045 = vperm.xlu0 %1044, %v1023
        %v1046 = vpop.permute.xlu0 %1045
        %1049 = vset.pattern.permute.xlu0 0
        %1050 = vperm.xlu0 %1049, %v1024
        %v1051 = vpop.permute.xlu0 %1050
        %1054 = vset.pattern.permute.xlu0 0
        %1055 = vperm.xlu0 %1054, %v1025
        %v1056 = vpop.permute.xlu0 %1055
        %1059 = vset.pattern.permute.xlu0 0
        %1060 = vperm.xlu0 %1059, %v1026
        %v1061 = vpop.permute.xlu0 %1060
        %1064 = vset.pattern.permute.xlu0 0
        %1065 = vperm.xlu0 %1064, %v1027
        %v1066 = vpop.permute.xlu0 %1065
        %vm1068 = vcmask 261120
        %v1070 = vsel %vm1068, %v1012, 0
        %v1073 = vsel %vm1068, %v1013, 0
        %v1076 = vsel %vm1068, %v1014, 0
        %v1079 = vsel %vm1068, %v1015, 0
        %v1082 = vsel %vm1068, %v1016, 0
        %v1085 = vsel %vm1068, %v1017, 0
        %v1088 = vsel %vm1068, %v1018, 0
        %v1091 = vsel %vm1068, %v1019, 0
        %1093 = vmatprep.subr.mxu0 0.0
        %1094 = vmatpush1.msra.mxu0 0.0
        %1095 = vmatprep.subr.mxu0 0.0
        %1096 = vmatpush1.msra.mxu0 0.0
        %1097 = vmatprep.subr.mxu0 0.0
        %1098 = vmatpush1.msra.mxu0 0.0
        %1099 = vmatprep.subr.mxu0 0.0
        %1100 = vmatpush1.msra.mxu0 0.0
        %1101 = vmatprep.subr.mxu0 0.0
        %1102 = vmatpush1.msra.mxu0 0.0
        %1103 = vmatprep.subr.mxu0 0.0
        %1104 = vmatpush1.msra.mxu0 0.0
        %1105 = vmatprep.subr.mxu0 0.0
        %1106 = vmatpush1.msra.mxu0 0.0
        %1107 = vmatprep.subr.mxu0 0.0
        %1108 = vmatpush1.msra.mxu0 0.0
        %1109 = vmatprep.subr.mxu0 0.0
        %1110 = vmatpush1.msra.mxu0 0.0
        %1111 = vmatprep.subr.mxu0 0.0
        %1112 = vmatpush1.msra.mxu0 0.0
        %1113 = vmatprep.subr.mxu0 0.0
        %1114 = vmatpush1.msra.mxu0 0.0
        %1115 = vmatprep.subr.mxu0 0.0
        %1116 = vmatpush1.msra.mxu0 0.0
        %1117 = vmatprep.subr.mxu0 %v1005
        %1118 = vmatpush1.msra.mxu0 %v1004
        %1119 = vmatprep.subr.mxu0 %v997
        %1120 = vmatpush1.msra.mxu0 %v996
        %1121 = vmatprep.subr.mxu0 %v989
        %1122 = vmatpush1.msra.mxu0 %v988
        %1123 = vmatprep.subr.mxu0 %v981
        %1124 = vmatpush1.msra.mxu0 %v980
        %1125 = vmatprep.subr.mxu0 0.0
        %1126 = vmatpush2.msra.mxu0 0.0
        %1127 = vmatprep.subr.mxu0 0.0
        %1128 = vmatpush2.msra.mxu0 0.0
        %1129 = vmatprep.subr.mxu0 0.0
        %1130 = vmatpush2.msra.mxu0 0.0
        %1131 = vmatprep.subr.mxu0 0.0
        %1132 = vmatpush2.msra.mxu0 0.0
        %1133 = vmatprep.subr.mxu0 0.0
        %1134 = vmatpush2.msra.mxu0 0.0
        %1135 = vmatprep.subr.mxu0 0.0
        %1136 = vmatpush2.msra.mxu0 0.0
        %1137 = vmatprep.subr.mxu0 0.0
        %1138 = vmatpush2.msra.mxu0 0.0
        %1139 = vmatprep.subr.mxu0 0.0
        %1140 = vmatpush2.msra.mxu0 0.0
        %1141 = vmatprep.subr.mxu0 0.0
        %1142 = vmatpush2.msra.mxu0 0.0
        %1143 = vmatprep.subr.mxu0 0.0
        %1144 = vmatpush2.msra.mxu0 0.0
        %1145 = vmatprep.subr.mxu0 0.0
        %1146 = vmatpush2.msra.mxu0 0.0
        %1147 = vmatprep.subr.mxu0 0.0
        %1148 = vmatpush2.msra.mxu0 0.0
        %1149 = vmatprep.subr.mxu0 0.0
        %1150 = vmatpush2.msra.mxu0 0.0
        %1151 = vmatprep.subr.mxu0 0.0
        %1152 = vmatpush2.msra.mxu0 0.0
        %1153 = vmatprep.subr.mxu0 0.0
        %1154 = vmatpush2.msra.mxu0 0.0
        %1155 = vmatprep.subr.mxu0 0.0
        %1156 = vmatpush2.msra.mxu0 0.0
        %1157 = vmatprep.mubr.f32.mxu0 0.0
        %1158 = vmatmul.mubr.f32.gmra.mxu0 %v1070
        %v1159 = vpop.f32.mrf.mxu0
        %v1160 = vadd.f32 %v1031, %v1159
        %v1161 = vpop.f32.mrf.mxu0
        %v1162 = vadd.f32 %v1031, %v1161
        %1163 = vmatprep.mubr.f32.mxu0 0.0
        %1164 = vmatmul.mubr.f32.gmra.mxu0 %v1073
        %v1165 = vpop.f32.mrf.mxu0
        %v1166 = vadd.f32 %v1036, %v1165
        %v1167 = vpop.f32.mrf.mxu0
        %v1168 = vadd.f32 %v1036, %v1167
        %1169 = vmatprep.mubr.f32.mxu0 0.0
        %1170 = vmatmul.mubr.f32.gmra.mxu0 %v1076
        %v1171 = vpop.f32.mrf.mxu0
        %v1172 = vadd.f32 %v1041, %v1171
        %v1173 = vpop.f32.mrf.mxu0
        %v1174 = vadd.f32 %v1041, %v1173
        %1175 = vmatprep.mubr.f32.mxu0 0.0
        %1176 = vmatmul.mubr.f32.gmra.mxu0 %v1079
        %v1177 = vpop.f32.mrf.mxu0
        %v1178 = vadd.f32 %v1046, %v1177
        %v1179 = vpop.f32.mrf.mxu0
        %v1180 = vadd.f32 %v1046, %v1179
        %1181 = vmatprep.mubr.f32.mxu0 0.0
        %1182 = vmatmul.mubr.f32.gmra.mxu0 %v1082
        %v1183 = vpop.f32.mrf.mxu0
        %v1184 = vadd.f32 %v1051, %v1183
        %v1185 = vpop.f32.mrf.mxu0
        %v1186 = vadd.f32 %v1051, %v1185
        %1187 = vmatprep.mubr.f32.mxu0 0.0
        %1188 = vmatmul.mubr.f32.gmra.mxu0 %v1085
        %v1189 = vpop.f32.mrf.mxu0
        %v1190 = vadd.f32 %v1056, %v1189
        %v1191 = vpop.f32.mrf.mxu0
        %v1192 = vadd.f32 %v1056, %v1191
        %1193 = vmatprep.mubr.f32.mxu0 0.0
        %1194 = vmatmul.mubr.f32.gmra.mxu0 %v1088
        %v1195 = vpop.f32.mrf.mxu0
        %v1196 = vadd.f32 %v1061, %v1195
        %v1197 = vpop.f32.mrf.mxu0
        %v1198 = vadd.f32 %v1061, %v1197
        %1199 = vmatprep.mubr.f32.mxu0 0.0
        %1200 = vmatmul.mubr.f32.gmra.mxu0 %v1091
        %v1201 = vpop.f32.mrf.mxu0
        %v1202 = vadd.f32 %v1066, %v1201
        %v1203 = vpop.f32.mrf.mxu0
        %v1204 = vadd.f32 %v1066, %v1203
        %1205 = vdwg.mxu0
        %1206 = vmatprep.subr.mxu0 0.0
        %1207 = vmatpush1.msra.mxu0 0.0
        %1208 = vmatprep.subr.mxu0 0.0
        %1209 = vmatpush1.msra.mxu0 0.0
        %1210 = vmatprep.subr.mxu0 0.0
        %1211 = vmatpush1.msra.mxu0 0.0
        %1212 = vmatprep.subr.mxu0 0.0
        %1213 = vmatpush1.msra.mxu0 0.0
        %1214 = vmatprep.subr.mxu0 0.0
        %1215 = vmatpush1.msra.mxu0 0.0
        %1216 = vmatprep.subr.mxu0 0.0
        %1217 = vmatpush1.msra.mxu0 0.0
        %1218 = vmatprep.subr.mxu0 0.0
        %1219 = vmatpush1.msra.mxu0 0.0
        %1220 = vmatprep.subr.mxu0 0.0
        %1221 = vmatpush1.msra.mxu0 0.0
        %1222 = vmatprep.subr.mxu0 0.0
        %1223 = vmatpush1.msra.mxu0 0.0
        %1224 = vmatprep.subr.mxu0 0.0
        %1225 = vmatpush1.msra.mxu0 0.0
        %1226 = vmatprep.subr.mxu0 0.0
        %1227 = vmatpush1.msra.mxu0 0.0
        %1228 = vmatprep.subr.mxu0 0.0
        %1229 = vmatpush1.msra.mxu0 0.0
        %1230 = vmatprep.subr.mxu0 %v1007
        %1231 = vmatpush1.msra.mxu0 %v1006
        %1232 = vmatprep.subr.mxu0 %v999
        %1233 = vmatpush1.msra.mxu0 %v998
        %1234 = vmatprep.subr.mxu0 %v991
        %1235 = vmatpush1.msra.mxu0 %v990
        %1236 = vmatprep.subr.mxu0 %v983
        %1237 = vmatpush1.msra.mxu0 %v982
        %1238 = vmatprep.subr.mxu0 0.0
        %1239 = vmatpush2.msra.mxu0 0.0
        %1240 = vmatprep.subr.mxu0 0.0
        %1241 = vmatpush2.msra.mxu0 0.0
        %1242 = vmatprep.subr.mxu0 0.0
        %1243 = vmatpush2.msra.mxu0 0.0
        %1244 = vmatprep.subr.mxu0 0.0
        %1245 = vmatpush2.msra.mxu0 0.0
        %1246 = vmatprep.subr.mxu0 0.0
        %1247 = vmatpush2.msra.mxu0 0.0
        %1248 = vmatprep.subr.mxu0 0.0
        %1249 = vmatpush2.msra.mxu0 0.0
        %1250 = vmatprep.subr.mxu0 0.0
        %1251 = vmatpush2.msra.mxu0 0.0
        %1252 = vmatprep.subr.mxu0 0.0
        %1253 = vmatpush2.msra.mxu0 0.0
        %1254 = vmatprep.subr.mxu0 0.0
        %1255 = vmatpush2.msra.mxu0 0.0
        %1256 = vmatprep.subr.mxu0 0.0
        %1257 = vmatpush2.msra.mxu0 0.0
        %1258 = vmatprep.subr.mxu0 0.0
        %1259 = vmatpush2.msra.mxu0 0.0
        %1260 = vmatprep.subr.mxu0 0.0
        %1261 = vmatpush2.msra.mxu0 0.0
        %1262 = vmatprep.subr.mxu0 0.0
        %1263 = vmatpush2.msra.mxu0 0.0
        %1264 = vmatprep.subr.mxu0 0.0
        %1265 = vmatpush2.msra.mxu0 0.0
        %1266 = vmatprep.subr.mxu0 0.0
        %1267 = vmatpush2.msra.mxu0 0.0
        %1268 = vmatprep.subr.mxu0 0.0
        %1269 = vmatpush2.msra.mxu0 0.0
        %1270 = vmatprep.mubr.f32.mxu0 0.0
        %1271 = vmatmul.mubr.f32.gmra.mxu0 %v1070
        %v1272 = vpop.f32.mrf.mxu0
        %v1273 = vadd.f32 %v1031, %v1272
        %v1274 = vpop.f32.mrf.mxu0
        %v1275 = vadd.f32 %v1031, %v1274
        %1276 = vmatprep.mubr.f32.mxu0 0.0
        %1277 = vmatmul.mubr.f32.gmra.mxu0 %v1073
        %v1278 = vpop.f32.mrf.mxu0
        %v1279 = vadd.f32 %v1036, %v1278
        %v1280 = vpop.f32.mrf.mxu0
        %v1281 = vadd.f32 %v1036, %v1280
        %1282 = vmatprep.mubr.f32.mxu0 0.0
        %1283 = vmatmul.mubr.f32.gmra.mxu0 %v1076
        %v1284 = vpop.f32.mrf.mxu0
        %v1285 = vadd.f32 %v1041, %v1284
        %v1286 = vpop.f32.mrf.mxu0
        %v1287 = vadd.f32 %v1041, %v1286
        %1288 = vmatprep.mubr.f32.mxu0 0.0
        %1289 = vmatmul.mubr.f32.gmra.mxu0 %v1079
        %v1290 = vpop.f32.mrf.mxu0
        %v1291 = vadd.f32 %v1046, %v1290
        %v1292 = vpop.f32.mrf.mxu0
        %v1293 = vadd.f32 %v1046, %v1292
        %1294 = vmatprep.mubr.f32.mxu0 0.0
        %1295 = vmatmul.mubr.f32.gmra.mxu0 %v1082
        %v1296 = vpop.f32.mrf.mxu0
        %v1297 = vadd.f32 %v1051, %v1296
        %v1298 = vpop.f32.mrf.mxu0
        %v1299 = vadd.f32 %v1051, %v1298
        %1300 = vmatprep.mubr.f32.mxu0 0.0
        %1301 = vmatmul.mubr.f32.gmra.mxu0 %v1085
        %v1302 = vpop.f32.mrf.mxu0
        %v1303 = vadd.f32 %v1056, %v1302
        %v1304 = vpop.f32.mrf.mxu0
        %v1305 = vadd.f32 %v1056, %v1304
        %1306 = vmatprep.mubr.f32.mxu0 0.0
        %1307 = vmatmul.mubr.f32.gmra.mxu0 %v1088
        %v1308 = vpop.f32.mrf.mxu0
        %v1309 = vadd.f32 %v1061, %v1308
        %v1310 = vpop.f32.mrf.mxu0
        %v1311 = vadd.f32 %v1061, %v1310
        %1312 = vmatprep.mubr.f32.mxu0 0.0
        %1313 = vmatmul.mubr.f32.gmra.mxu0 %v1091
        %v1314 = vpop.f32.mrf.mxu0
        %v1315 = vadd.f32 %v1066, %v1314
        %v1316 = vpop.f32.mrf.mxu0
        %v1317 = vadd.f32 %v1066, %v1316
        %1318 = vdwg.mxu0
        %1319 = vmatprep.subr.mxu0 0.0
        %1320 = vmatpush1.msra.mxu0 0.0
        %1321 = vmatprep.subr.mxu0 0.0
        %1322 = vmatpush1.msra.mxu0 0.0
        %1323 = vmatprep.subr.mxu0 0.0
        %1324 = vmatpush1.msra.mxu0 0.0
        %1325 = vmatprep.subr.mxu0 0.0
        %1326 = vmatpush1.msra.mxu0 0.0
        %1327 = vmatprep.subr.mxu0 0.0
        %1328 = vmatpush1.msra.mxu0 0.0
        %1329 = vmatprep.subr.mxu0 0.0
        %1330 = vmatpush1.msra.mxu0 0.0
        %1331 = vmatprep.subr.mxu0 0.0
        %1332 = vmatpush1.msra.mxu0 0.0
        %1333 = vmatprep.subr.mxu0 0.0
        %1334 = vmatpush1.msra.mxu0 0.0
        %1335 = vmatprep.subr.mxu0 0.0
        %1336 = vmatpush1.msra.mxu0 0.0
        %1337 = vmatprep.subr.mxu0 0.0
        %1338 = vmatpush1.msra.mxu0 0.0
        %1339 = vmatprep.subr.mxu0 0.0
        %1340 = vmatpush1.msra.mxu0 0.0
        %1341 = vmatprep.subr.mxu0 0.0
        %1342 = vmatpush1.msra.mxu0 0.0
        %1343 = vmatprep.subr.mxu0 %v1009
        %1344 = vmatpush1.msra.mxu0 %v1008
        %1345 = vmatprep.subr.mxu0 %v1001
        %1346 = vmatpush1.msra.mxu0 %v1000
        %1347 = vmatprep.subr.mxu0 %v993
        %1348 = vmatpush1.msra.mxu0 %v992
        %1349 = vmatprep.subr.mxu0 %v985
        %1350 = vmatpush1.msra.mxu0 %v984
        %1351 = vmatprep.subr.mxu0 0.0
        %1352 = vmatpush2.msra.mxu0 0.0
        %1353 = vmatprep.subr.mxu0 0.0
        %1354 = vmatpush2.msra.mxu0 0.0
        %1355 = vmatprep.subr.mxu0 0.0
        %1356 = vmatpush2.msra.mxu0 0.0
        %1357 = vmatprep.subr.mxu0 0.0
        %1358 = vmatpush2.msra.mxu0 0.0
        %1359 = vmatprep.subr.mxu0 0.0
        %1360 = vmatpush2.msra.mxu0 0.0
        %1361 = vmatprep.subr.mxu0 0.0
        %1362 = vmatpush2.msra.mxu0 0.0
        %1363 = vmatprep.subr.mxu0 0.0
        %1364 = vmatpush2.msra.mxu0 0.0
        %1365 = vmatprep.subr.mxu0 0.0
        %1366 = vmatpush2.msra.mxu0 0.0
        %1367 = vmatprep.subr.mxu0 0.0
        %1368 = vmatpush2.msra.mxu0 0.0
        %1369 = vmatprep.subr.mxu0 0.0
        %1370 = vmatpush2.msra.mxu0 0.0
        %1371 = vmatprep.subr.mxu0 0.0
        %1372 = vmatpush2.msra.mxu0 0.0
        %1373 = vmatprep.subr.mxu0 0.0
        %1374 = vmatpush2.msra.mxu0 0.0
        %1375 = vmatprep.subr.mxu0 0.0
        %1376 = vmatpush2.msra.mxu0 0.0
        %1377 = vmatprep.subr.mxu0 0.0
        %1378 = vmatpush2.msra.mxu0 0.0
        %1379 = vmatprep.subr.mxu0 0.0
        %1380 = vmatpush2.msra.mxu0 0.0
        %1381 = vmatprep.subr.mxu0 0.0
        %1382 = vmatpush2.msra.mxu0 0.0
        %1383 = vmatprep.mubr.f32.mxu0 0.0
        %1384 = vmatmul.mubr.f32.gmra.mxu0 %v1070
        %v1385 = vpop.f32.mrf.mxu0
        %v1386 = vadd.f32 %v1031, %v1385
        %v1387 = vpop.f32.mrf.mxu0
        %v1388 = vadd.f32 %v1031, %v1387
        %1389 = vmatprep.mubr.f32.mxu0 0.0
        %1390 = vmatmul.mubr.f32.gmra.mxu0 %v1073
        %v1391 = vpop.f32.mrf.mxu0
        %v1392 = vadd.f32 %v1036, %v1391
        %v1393 = vpop.f32.mrf.mxu0
        %v1394 = vadd.f32 %v1036, %v1393
        %1395 = vmatprep.mubr.f32.mxu0 0.0
        %1396 = vmatmul.mubr.f32.gmra.mxu0 %v1076
        %v1397 = vpop.f32.mrf.mxu0
        %v1398 = vadd.f32 %v1041, %v1397
        %v1399 = vpop.f32.mrf.mxu0
        %v1400 = vadd.f32 %v1041, %v1399
        %1401 = vmatprep.mubr.f32.mxu0 0.0
        %1402 = vmatmul.mubr.f32.gmra.mxu0 %v1079
        %v1403 = vpop.f32.mrf.mxu0
        %v1404 = vadd.f32 %v1046, %v1403
        %v1405 = vpop.f32.mrf.mxu0
        %v1406 = vadd.f32 %v1046, %v1405
        %1407 = vmatprep.mubr.f32.mxu0 0.0
        %1408 = vmatmul.mubr.f32.gmra.mxu0 %v1082
        %v1409 = vpop.f32.mrf.mxu0
        %v1410 = vadd.f32 %v1051, %v1409
        %v1411 = vpop.f32.mrf.mxu0
        %v1412 = vadd.f32 %v1051, %v1411
        %1413 = vmatprep.mubr.f32.mxu0 0.0
        %1414 = vmatmul.mubr.f32.gmra.mxu0 %v1085
        %v1415 = vpop.f32.mrf.mxu0
        %v1416 = vadd.f32 %v1056, %v1415
        %v1417 = vpop.f32.mrf.mxu0
        %v1418 = vadd.f32 %v1056, %v1417
        %1419 = vmatprep.mubr.f32.mxu0 0.0
        %1420 = vmatmul.mubr.f32.gmra.mxu0 %v1088
        %v1421 = vpop.f32.mrf.mxu0
        %v1422 = vadd.f32 %v1061, %v1421
        %v1423 = vpop.f32.mrf.mxu0
        %v1424 = vadd.f32 %v1061, %v1423
        %1425 = vmatprep.mubr.f32.mxu0 0.0
        %1426 = vmatmul.mubr.f32.gmra.mxu0 %v1091
        %v1427 = vpop.f32.mrf.mxu0
        %v1428 = vadd.f32 %v1066, %v1427
        %v1429 = vpop.f32.mrf.mxu0
        %v1430 = vadd.f32 %v1066, %v1429
        %1431 = vdwg.mxu0
        %1432 = vmatprep.subr.mxu0 0.0
        %1433 = vmatpush1.msra.mxu0 0.0
        %1434 = vmatprep.subr.mxu0 0.0
        %1435 = vmatpush1.msra.mxu0 0.0
        %1436 = vmatprep.subr.mxu0 0.0
        %1437 = vmatpush1.msra.mxu0 0.0
        %1438 = vmatprep.subr.mxu0 0.0
        %1439 = vmatpush1.msra.mxu0 0.0
        %1440 = vmatprep.subr.mxu0 0.0
        %1441 = vmatpush1.msra.mxu0 0.0
        %1442 = vmatprep.subr.mxu0 0.0
        %1443 = vmatpush1.msra.mxu0 0.0
        %1444 = vmatprep.subr.mxu0 0.0
        %1445 = vmatpush1.msra.mxu0 0.0
        %1446 = vmatprep.subr.mxu0 0.0
        %1447 = vmatpush1.msra.mxu0 0.0
        %1448 = vmatprep.subr.mxu0 0.0
        %1449 = vmatpush1.msra.mxu0 0.0
        %1450 = vmatprep.subr.mxu0 0.0
        %1451 = vmatpush1.msra.mxu0 0.0
        %1452 = vmatprep.subr.mxu0 0.0
        %1453 = vmatpush1.msra.mxu0 0.0
        %1454 = vmatprep.subr.mxu0 0.0
        %1455 = vmatpush1.msra.mxu0 0.0
        %1456 = vmatprep.subr.mxu0 %v1011
        %1457 = vmatpush1.msra.mxu0 %v1010
        %1458 = vmatprep.subr.mxu0 %v1003
        %1459 = vmatpush1.msra.mxu0 %v1002
        %1460 = vmatprep.subr.mxu0 %v995
        %1461 = vmatpush1.msra.mxu0 %v994
        %1462 = vmatprep.subr.mxu0 %v987
        %1463 = vmatpush1.msra.mxu0 %v986
        %1464 = vmatprep.subr.mxu0 0.0
        %1465 = vmatpush2.msra.mxu0 0.0
        %1466 = vmatprep.subr.mxu0 0.0
        %1467 = vmatpush2.msra.mxu0 0.0
        %1468 = vmatprep.subr.mxu0 0.0
        %1469 = vmatpush2.msra.mxu0 0.0
        %1470 = vmatprep.subr.mxu0 0.0
        %1471 = vmatpush2.msra.mxu0 0.0
        %1472 = vmatprep.subr.mxu0 0.0
        %1473 = vmatpush2.msra.mxu0 0.0
        %1474 = vmatprep.subr.mxu0 0.0
        %1475 = vmatpush2.msra.mxu0 0.0
        %1476 = vmatprep.subr.mxu0 0.0
        %1477 = vmatpush2.msra.mxu0 0.0
        %1478 = vmatprep.subr.mxu0 0.0
        %1479 = vmatpush2.msra.mxu0 0.0
        %1480 = vmatprep.subr.mxu0 0.0
        %1481 = vmatpush2.msra.mxu0 0.0
        %1482 = vmatprep.subr.mxu0 0.0
        %1483 = vmatpush2.msra.mxu0 0.0
        %1484 = vmatprep.subr.mxu0 0.0
        %1485 = vmatpush2.msra.mxu0 0.0
        %1486 = vmatprep.subr.mxu0 0.0
        %1487 = vmatpush2.msra.mxu0 0.0
        %1488 = vmatprep.subr.mxu0 0.0
        %1489 = vmatpush2.msra.mxu0 0.0
        %1490 = vmatprep.subr.mxu0 0.0
        %1491 = vmatpush2.msra.mxu0 0.0
        %1492 = vmatprep.subr.mxu0 0.0
        %1493 = vmatpush2.msra.mxu0 0.0
        %1494 = vmatprep.subr.mxu0 0.0
        %1495 = vmatpush2.msra.mxu0 0.0
        %1496 = vmatprep.mubr.f32.mxu0 0.0
        %1497 = vmatmul.mubr.f32.gmra.mxu0 %v1070
        %v1498 = vpop.f32.mrf.mxu0
        %v1499 = vadd.f32 %v1031, %v1498
        %v1500 = vpop.f32.mrf.mxu0
        %v1501 = vadd.f32 %v1031, %v1500
        %1502 = vmatprep.mubr.f32.mxu0 0.0
        %1503 = vmatmul.mubr.f32.gmra.mxu0 %v1073
        %v1504 = vpop.f32.mrf.mxu0
        %v1505 = vadd.f32 %v1036, %v1504
        %v1506 = vpop.f32.mrf.mxu0
        %v1507 = vadd.f32 %v1036, %v1506
        %1508 = vmatprep.mubr.f32.mxu0 0.0
        %1509 = vmatmul.mubr.f32.gmra.mxu0 %v1076
        %v1510 = vpop.f32.mrf.mxu0
        %v1511 = vadd.f32 %v1041, %v1510
        %v1512 = vpop.f32.mrf.mxu0
        %v1513 = vadd.f32 %v1041, %v1512
        %1514 = vmatprep.mubr.f32.mxu0 0.0
        %1515 = vmatmul.mubr.f32.gmra.mxu0 %v1079
        %v1516 = vpop.f32.mrf.mxu0
        %v1517 = vadd.f32 %v1046, %v1516
        %v1518 = vpop.f32.mrf.mxu0
        %v1519 = vadd.f32 %v1046, %v1518
        %1520 = vmatprep.mubr.f32.mxu0 0.0
        %1521 = vmatmul.mubr.f32.gmra.mxu0 %v1082
        %v1522 = vpop.f32.mrf.mxu0
        %v1523 = vadd.f32 %v1051, %v1522
        %v1524 = vpop.f32.mrf.mxu0
        %v1525 = vadd.f32 %v1051, %v1524
        %1526 = vmatprep.mubr.f32.mxu0 0.0
        %1527 = vmatmul.mubr.f32.gmra.mxu0 %v1085
        %v1528 = vpop.f32.mrf.mxu0
        %v1529 = vadd.f32 %v1056, %v1528
        %v1530 = vpop.f32.mrf.mxu0
        %v1531 = vadd.f32 %v1056, %v1530
        %1532 = vmatprep.mubr.f32.mxu0 0.0
        %1533 = vmatmul.mubr.f32.gmra.mxu0 %v1088
        %v1534 = vpop.f32.mrf.mxu0
        %v1535 = vadd.f32 %v1061, %v1534
        %v1536 = vpop.f32.mrf.mxu0
        %v1537 = vadd.f32 %v1061, %v1536
        %1538 = vmatprep.mubr.f32.mxu0 0.0
        %1539 = vmatmul.mubr.f32.gmra.mxu0 %v1091
        %v1540 = vpop.f32.mrf.mxu0
        %v1541 = vadd.f32 %v1066, %v1540
        %v1542 = vpop.f32.mrf.mxu0
        %v1543 = vadd.f32 %v1066, %v1542
        %1544 = vdwg.mxu0
        %v1545 = vmax.f32 %v1160, 0.0
        %v1546 = vmax.f32 %v1162, 0.0
        %v1547 = vmax.f32 %v1273, 0.0
        %v1548 = vmax.f32 %v1275, 0.0
        %v1549 = vmax.f32 %v1386, 0.0
        %v1550 = vmax.f32 %v1388, 0.0
        %v1551 = vmax.f32 %v1499, 0.0
        %v1552 = vmax.f32 %v1501, 0.0
        %v1553 = vmax.f32 %v1166, 0.0
        %v1554 = vmax.f32 %v1168, 0.0
        %v1555 = vmax.f32 %v1279, 0.0
        %v1556 = vmax.f32 %v1281, 0.0
        %v1557 = vmax.f32 %v1392, 0.0
        %v1558 = vmax.f32 %v1394, 0.0
        %v1559 = vmax.f32 %v1505, 0.0
        %v1560 = vmax.f32 %v1507, 0.0
        %v1561 = vmax.f32 %v1172, 0.0
        %v1562 = vmax.f32 %v1174, 0.0
        %v1563 = vmax.f32 %v1285, 0.0
        %v1564 = vmax.f32 %v1287, 0.0
        %v1565 = vmax.f32 %v1398, 0.0
        %v1566 = vmax.f32 %v1400, 0.0
        %v1567 = vmax.f32 %v1511, 0.0
        %v1568 = vmax.f32 %v1513, 0.0
        %v1569 = vmax.f32 %v1178, 0.0
        %v1570 = vmax.f32 %v1180, 0.0
        %v1571 = vmax.f32 %v1291, 0.0
        %v1572 = vmax.f32 %v1293, 0.0
        %v1573 = vmax.f32 %v1404, 0.0
        %v1574 = vmax.f32 %v1406, 0.0
        %v1575 = vmax.f32 %v1517, 0.0
        %v1576 = vmax.f32 %v1519, 0.0
        %v1577 = vmax.f32 %v1184, 0.0
        %v1578 = vmax.f32 %v1186, 0.0
        %v1579 = vmax.f32 %v1297, 0.0
        %v1580 = vmax.f32 %v1299, 0.0
        %v1581 = vmax.f32 %v1410, 0.0
        %v1582 = vmax.f32 %v1412, 0.0
        %v1583 = vmax.f32 %v1523, 0.0
        %v1584 = vmax.f32 %v1525, 0.0
        %v1585 = vmax.f32 %v1190, 0.0
        %v1586 = vmax.f32 %v1192, 0.0
        %v1587 = vmax.f32 %v1303, 0.0
        %v1588 = vmax.f32 %v1305, 0.0
        %v1589 = vmax.f32 %v1416, 0.0
        %v1590 = vmax.f32 %v1418, 0.0
        %v1591 = vmax.f32 %v1529, 0.0
        %v1592 = vmax.f32 %v1531, 0.0
        %v1593 = vmax.f32 %v1196, 0.0
        %v1594 = vmax.f32 %v1198, 0.0
        %v1595 = vmax.f32 %v1309, 0.0
        %v1596 = vmax.f32 %v1311, 0.0
        %v1597 = vmax.f32 %v1422, 0.0
        %v1598 = vmax.f32 %v1424, 0.0
        %v1599 = vmax.f32 %v1535, 0.0
        %v1600 = vmax.f32 %v1537, 0.0
        %v1601 = vmax.f32 %v1202, 0.0
        %v1602 = vmax.f32 %v1204, 0.0
        %v1603 = vmax.f32 %v1315, 0.0
        %v1604 = vmax.f32 %v1317, 0.0
        %v1605 = vmax.f32 %v1428, 0.0
        %v1606 = vmax.f32 %v1430, 0.0
        %v1607 = vmax.f32 %v1541, 0.0
        %v1608 = vmax.f32 %v1543, 0.0
        %v1609 = vld [vmem:[%s7] sm:$0xff]
        %v1610 = vld [vmem:[%s7 + $0x8] sm:$0xff]
        %v1611 = vld [vmem:[%s7 + $0x10] sm:$0xff]
        %v1612 = vld [vmem:[%s7 + $0x18] sm:$0xff]
        %v1613 = vld [vmem:[%s7 + $0x20] sm:$0xff]
        %v1614 = vld [vmem:[%s7 + $0x28] sm:$0xff]
        %v1615 = vld [vmem:[%s7 + $0x30] sm:$0xff]
        %v1616 = vld [vmem:[%s7 + $0x38] sm:$0xff]
        %v1617 = vld [vmem:[%s7 + $0x40] sm:$0xff]
        %v1618 = vld [vmem:[%s7 + $0x48] sm:$0xff]
        %v1619 = vld [vmem:[%s7 + $0x50] sm:$0xff]
        %v1620 = vld [vmem:[%s7 + $0x58] sm:$0xff]
        %v1621 = vld [vmem:[%s7 + $0x60] sm:$0xff]
        %v1622 = vld [vmem:[%s7 + $0x68] sm:$0xff]
        %v1623 = vld [vmem:[%s7 + $0x70] sm:$0xff]
        %v1624 = vld [vmem:[%s7 + $0x78] sm:$0xff]
        %v1625 = vld [vmem:[%s8] sm:$0xff]
        %v1626 = vld [vmem:[%s8 + $0x8] sm:$0xff]
        %v1627 = vld [vmem:[%s8 + $0x10] sm:$0xff]
        %v1628 = vld [vmem:[%s8 + $0x18] sm:$0xff]
        %v1629 = vld [vmem:[%s8 + $0x20] sm:$0xff]
        %v1630 = vld [vmem:[%s8 + $0x28] sm:$0xff]
        %v1631 = vld [vmem:[%s8 + $0x30] sm:$0xff]
        %v1632 = vld [vmem:[%s8 + $0x38] sm:$0xff]
        %v1633 = vld [vmem:[%s8 + $0x40] sm:$0xff]
        %v1634 = vld [vmem:[%s8 + $0x48] sm:$0xff]
        %v1635 = vld [vmem:[%s8 + $0x50] sm:$0xff]
        %v1636 = vld [vmem:[%s8 + $0x58] sm:$0xff]
        %v1637 = vld [vmem:[%s8 + $0x60] sm:$0xff]
        %v1638 = vld [vmem:[%s8 + $0x68] sm:$0xff]
        %v1639 = vld [vmem:[%s8 + $0x70] sm:$0xff]
        %v1640 = vld [vmem:[%s8 + $0x78] sm:$0xff]
        %1642 = vset.pattern.permute.xlu0 0
        %1643 = vperm.xlu0 %1642, %v1625
        %v1644 = vpop.permute.xlu0 %1643
        %1647 = vset.pattern.permute.xlu0 0
        %1648 = vperm.xlu0 %1647, %v1626
        %v1649 = vpop.permute.xlu0 %1648
        %1652 = vset.pattern.permute.xlu0 0
        %1653 = vperm.xlu0 %1652, %v1627
        %v1654 = vpop.permute.xlu0 %1653
        %1657 = vset.pattern.permute.xlu0 0
        %1658 = vperm.xlu0 %1657, %v1628
        %v1659 = vpop.permute.xlu0 %1658
        %1662 = vset.pattern.permute.xlu0 0
        %1663 = vperm.xlu0 %1662, %v1629
        %v1664 = vpop.permute.xlu0 %1663
        %1667 = vset.pattern.permute.xlu0 0
        %1668 = vperm.xlu0 %1667, %v1630
        %v1669 = vpop.permute.xlu0 %1668
        %1672 = vset.pattern.permute.xlu0 0
        %1673 = vperm.xlu0 %1672, %v1631
        %v1674 = vpop.permute.xlu0 %1673
        %1677 = vset.pattern.permute.xlu0 0
        %1678 = vperm.xlu0 %1677, %v1632
        %v1679 = vpop.permute.xlu0 %1678
        %1682 = vset.pattern.permute.xlu0 0
        %1683 = vperm.xlu0 %1682, %v1633
        %v1684 = vpop.permute.xlu0 %1683
        %1687 = vset.pattern.permute.xlu0 0
        %1688 = vperm.xlu0 %1687, %v1634
        %v1689 = vpop.permute.xlu0 %1688
        %1692 = vset.pattern.permute.xlu0 0
        %1693 = vperm.xlu0 %1692, %v1635
        %v1694 = vpop.permute.xlu0 %1693
        %1697 = vset.pattern.permute.xlu0 0
        %1698 = vperm.xlu0 %1697, %v1636
        %v1699 = vpop.permute.xlu0 %1698
        %1702 = vset.pattern.permute.xlu0 0
        %1703 = vperm.xlu0 %1702, %v1637
        %v1704 = vpop.permute.xlu0 %1703
        %1707 = vset.pattern.permute.xlu0 0
        %1708 = vperm.xlu0 %1707, %v1638
        %v1709 = vpop.permute.xlu0 %1708
        %1712 = vset.pattern.permute.xlu0 0
        %1713 = vperm.xlu0 %1712, %v1639
        %v1714 = vpop.permute.xlu0 %1713
        %1717 = vset.pattern.permute.xlu0 0
        %1718 = vperm.xlu0 %1717, %v1640
        %v1719 = vpop.permute.xlu0 %1718
        %vm1721 = vcmask 523264
        %v1723 = vsel %vm1721, %v1609, 0
        %v1726 = vsel %vm1721, %v1610, 0
        %v1729 = vsel %vm1721, %v1611, 0
        %v1732 = vsel %vm1721, %v1612, 0
        %v1735 = vsel %vm1721, %v1613, 0
        %v1738 = vsel %vm1721, %v1614, 0
        %v1741 = vsel %vm1721, %v1615, 0
        %v1744 = vsel %vm1721, %v1616, 0
        %v1747 = vsel %vm1721, %v1617, 0
        %v1750 = vsel %vm1721, %v1618, 0
        %v1753 = vsel %vm1721, %v1619, 0
        %v1756 = vsel %vm1721, %v1620, 0
        %v1759 = vsel %vm1721, %v1621, 0
        %v1762 = vsel %vm1721, %v1622, 0
        %v1765 = vsel %vm1721, %v1623, 0
        %v1768 = vsel %vm1721, %v1624, 0
        %1770 = vmatprep.subr.mxu0 0.0
        %1771 = vmatpush1.msra.mxu0 0.0
        %1772 = vmatprep.subr.mxu0 0.0
        %1773 = vmatpush1.msra.mxu0 0.0
        %1774 = vmatprep.subr.mxu0 0.0
        %1775 = vmatpush1.msra.mxu0 0.0
        %1776 = vmatprep.subr.mxu0 0.0
        %1777 = vmatpush1.msra.mxu0 0.0
        %1778 = vmatprep.subr.mxu0 0.0
        %1779 = vmatpush1.msra.mxu0 0.0
        %1780 = vmatprep.subr.mxu0 0.0
        %1781 = vmatpush1.msra.mxu0 0.0
        %1782 = vmatprep.subr.mxu0 0.0
        %1783 = vmatpush1.msra.mxu0 0.0
        %1784 = vmatprep.subr.mxu0 0.0
        %1785 = vmatpush1.msra.mxu0 0.0
        %1786 = vmatprep.subr.mxu0 %v1602
        %1787 = vmatpush1.msra.mxu0 %v1601
        %1788 = vmatprep.subr.mxu0 %v1594
        %1789 = vmatpush1.msra.mxu0 %v1593
        %1790 = vmatprep.subr.mxu0 %v1586
        %1791 = vmatpush1.msra.mxu0 %v1585
        %1792 = vmatprep.subr.mxu0 %v1578
        %1793 = vmatpush1.msra.mxu0 %v1577
        %1794 = vmatprep.subr.mxu0 %v1570
        %1795 = vmatpush1.msra.mxu0 %v1569
        %1796 = vmatprep.subr.mxu0 %v1562
        %1797 = vmatpush1.msra.mxu0 %v1561
        %1798 = vmatprep.subr.mxu0 %v1554
        %1799 = vmatpush1.msra.mxu0 %v1553
        %1800 = vmatprep.subr.mxu0 %v1546
        %1801 = vmatpush1.msra.mxu0 %v1545
        %1802 = vmatprep.subr.mxu0 0.0
        %1803 = vmatpush2.msra.mxu0 0.0
        %1804 = vmatprep.subr.mxu0 0.0
        %1805 = vmatpush2.msra.mxu0 0.0
        %1806 = vmatprep.subr.mxu0 0.0
        %1807 = vmatpush2.msra.mxu0 0.0
        %1808 = vmatprep.subr.mxu0 0.0
        %1809 = vmatpush2.msra.mxu0 0.0
        %1810 = vmatprep.subr.mxu0 0.0
        %1811 = vmatpush2.msra.mxu0 0.0
        %1812 = vmatprep.subr.mxu0 0.0
        %1813 = vmatpush2.msra.mxu0 0.0
        %1814 = vmatprep.subr.mxu0 0.0
        %1815 = vmatpush2.msra.mxu0 0.0
        %1816 = vmatprep.subr.mxu0 0.0
        %1817 = vmatpush2.msra.mxu0 0.0
        %1818 = vmatprep.subr.mxu0 0.0
        %1819 = vmatpush2.msra.mxu0 0.0
        %1820 = vmatprep.subr.mxu0 0.0
        %1821 = vmatpush2.msra.mxu0 0.0
        %1822 = vmatprep.subr.mxu0 0.0
        %1823 = vmatpush2.msra.mxu0 0.0
        %1824 = vmatprep.subr.mxu0 0.0
        %1825 = vmatpush2.msra.mxu0 0.0
        %1826 = vmatprep.subr.mxu0 0.0
        %1827 = vmatpush2.msra.mxu0 0.0
        %1828 = vmatprep.subr.mxu0 0.0
        %1829 = vmatpush2.msra.mxu0 0.0
        %1830 = vmatprep.subr.mxu0 0.0
        %1831 = vmatpush2.msra.mxu0 0.0
        %1832 = vmatprep.subr.mxu0 0.0
        %1833 = vmatpush2.msra.mxu0 0.0
        %1834 = vmatprep.mubr.f32.mxu0 0.0
        %1835 = vmatmul.mubr.f32.gmra.mxu0 %v1723
        %v1836 = vpop.f32.mrf.mxu0
        %v1837 = vadd.f32 %v1644, %v1836
        %v1838 = vpop.f32.mrf.mxu0
        %v1839 = vadd.f32 %v1644, %v1838
        %1840 = vmatprep.mubr.f32.mxu0 0.0
        %1841 = vmatmul.mubr.f32.gmra.mxu0 %v1726
        %v1842 = vpop.f32.mrf.mxu0
        %v1843 = vadd.f32 %v1649, %v1842
        %v1844 = vpop.f32.mrf.mxu0
        %v1845 = vadd.f32 %v1649, %v1844
        %1846 = vmatprep.mubr.f32.mxu0 0.0
        %1847 = vmatmul.mubr.f32.gmra.mxu0 %v1729
        %v1848 = vpop.f32.mrf.mxu0
        %v1849 = vadd.f32 %v1654, %v1848
        %v1850 = vpop.f32.mrf.mxu0
        %v1851 = vadd.f32 %v1654, %v1850
        %1852 = vmatprep.mubr.f32.mxu0 0.0
        %1853 = vmatmul.mubr.f32.gmra.mxu0 %v1732
        %v1854 = vpop.f32.mrf.mxu0
        %v1855 = vadd.f32 %v1659, %v1854
        %v1856 = vpop.f32.mrf.mxu0
        %v1857 = vadd.f32 %v1659, %v1856
        %1858 = vmatprep.mubr.f32.mxu0 0.0
        %1859 = vmatmul.mubr.f32.gmra.mxu0 %v1735
        %v1860 = vpop.f32.mrf.mxu0
        %v1861 = vadd.f32 %v1664, %v1860
        %v1862 = vpop.f32.mrf.mxu0
        %v1863 = vadd.f32 %v1664, %v1862
        %1864 = vmatprep.mubr.f32.mxu0 0.0
        %1865 = vmatmul.mubr.f32.gmra.mxu0 %v1738
        %v1866 = vpop.f32.mrf.mxu0
        %v1867 = vadd.f32 %v1669, %v1866
        %v1868 = vpop.f32.mrf.mxu0
        %v1869 = vadd.f32 %v1669, %v1868
        %1870 = vmatprep.mubr.f32.mxu0 0.0
        %1871 = vmatmul.mubr.f32.gmra.mxu0 %v1741
        %v1872 = vpop.f32.mrf.mxu0
        %v1873 = vadd.f32 %v1674, %v1872
        %v1874 = vpop.f32.mrf.mxu0
        %v1875 = vadd.f32 %v1674, %v1874
        %1876 = vmatprep.mubr.f32.mxu0 0.0
        %1877 = vmatmul.mubr.f32.gmra.mxu0 %v1744
        %v1878 = vpop.f32.mrf.mxu0
        %v1879 = vadd.f32 %v1679, %v1878
        %v1880 = vpop.f32.mrf.mxu0
        %v1881 = vadd.f32 %v1679, %v1880
        %1882 = vmatprep.mubr.f32.mxu0 0.0
        %1883 = vmatmul.mubr.f32.gmra.mxu0 %v1747
        %v1884 = vpop.f32.mrf.mxu0
        %v1885 = vadd.f32 %v1684, %v1884
        %v1886 = vpop.f32.mrf.mxu0
        %v1887 = vadd.f32 %v1684, %v1886
        %1888 = vmatprep.mubr.f32.mxu0 0.0
        %1889 = vmatmul.mubr.f32.gmra.mxu0 %v1750
        %v1890 = vpop.f32.mrf.mxu0
        %v1891 = vadd.f32 %v1689, %v1890
        %v1892 = vpop.f32.mrf.mxu0
        %v1893 = vadd.f32 %v1689, %v1892
        %1894 = vmatprep.mubr.f32.mxu0 0.0
        %1895 = vmatmul.mubr.f32.gmra.mxu0 %v1753
        %v1896 = vpop.f32.mrf.mxu0
        %v1897 = vadd.f32 %v1694, %v1896
        %v1898 = vpop.f32.mrf.mxu0
        %v1899 = vadd.f32 %v1694, %v1898
        %1900 = vmatprep.mubr.f32.mxu0 0.0
        %1901 = vmatmul.mubr.f32.gmra.mxu0 %v1756
        %v1902 = vpop.f32.mrf.mxu0
        %v1903 = vadd.f32 %v1699, %v1902
        %v1904 = vpop.f32.mrf.mxu0
        %v1905 = vadd.f32 %v1699, %v1904
        %1906 = vmatprep.mubr.f32.mxu0 0.0
        %1907 = vmatmul.mubr.f32.gmra.mxu0 %v1759
        %v1908 = vpop.f32.mrf.mxu0
        %v1909 = vadd.f32 %v1704, %v1908
        %v1910 = vpop.f32.mrf.mxu0
        %v1911 = vadd.f32 %v1704, %v1910
        %1912 = vmatprep.mubr.f32.mxu0 0.0
        %1913 = vmatmul.mubr.f32.gmra.mxu0 %v1762
        %v1914 = vpop.f32.mrf.mxu0
        %v1915 = vadd.f32 %v1709, %v1914
        %v1916 = vpop.f32.mrf.mxu0
        %v1917 = vadd.f32 %v1709, %v1916
        %1918 = vmatprep.mubr.f32.mxu0 0.0
        %1919 = vmatmul.mubr.f32.gmra.mxu0 %v1765
        %v1920 = vpop.f32.mrf.mxu0
        %v1921 = vadd.f32 %v1714, %v1920
        %v1922 = vpop.f32.mrf.mxu0
        %v1923 = vadd.f32 %v1714, %v1922
        %1924 = vmatprep.mubr.f32.mxu0 0.0
        %1925 = vmatmul.mubr.f32.gmra.mxu0 %v1768
        %v1926 = vpop.f32.mrf.mxu0
        %v1927 = vadd.f32 %v1719, %v1926
        %v1928 = vpop.f32.mrf.mxu0
        %v1929 = vadd.f32 %v1719, %v1928
        %1930 = vdwg.mxu0
        %1931 = vmatprep.subr.mxu0 0.0
        %1932 = vmatpush1.msra.mxu0 0.0
        %1933 = vmatprep.subr.mxu0 0.0
        %1934 = vmatpush1.msra.mxu0 0.0
        %1935 = vmatprep.subr.mxu0 0.0
        %1936 = vmatpush1.msra.mxu0 0.0
        %1937 = vmatprep.subr.mxu0 0.0
        %1938 = vmatpush1.msra.mxu0 0.0
        %1939 = vmatprep.subr.mxu0 0.0
        %1940 = vmatpush1.msra.mxu0 0.0
        %1941 = vmatprep.subr.mxu0 0.0
        %1942 = vmatpush1.msra.mxu0 0.0
        %1943 = vmatprep.subr.mxu0 0.0
        %1944 = vmatpush1.msra.mxu0 0.0
        %1945 = vmatprep.subr.mxu0 0.0
        %1946 = vmatpush1.msra.mxu0 0.0
        %1947 = vmatprep.subr.mxu0 %v1604
        %1948 = vmatpush1.msra.mxu0 %v1603
        %1949 = vmatprep.subr.mxu0 %v1596
        %1950 = vmatpush1.msra.mxu0 %v1595
        %1951 = vmatprep.subr.mxu0 %v1588
        %1952 = vmatpush1.msra.mxu0 %v1587
        %1953 = vmatprep.subr.mxu0 %v1580
        %1954 = vmatpush1.msra.mxu0 %v1579
        %1955 = vmatprep.subr.mxu0 %v1572
        %1956 = vmatpush1.msra.mxu0 %v1571
        %1957 = vmatprep.subr.mxu0 %v1564
        %1958 = vmatpush1.msra.mxu0 %v1563
        %1959 = vmatprep.subr.mxu0 %v1556
        %1960 = vmatpush1.msra.mxu0 %v1555
        %1961 = vmatprep.subr.mxu0 %v1548
        %1962 = vmatpush1.msra.mxu0 %v1547
        %1963 = vmatprep.subr.mxu0 0.0
        %1964 = vmatpush2.msra.mxu0 0.0
        %1965 = vmatprep.subr.mxu0 0.0
        %1966 = vmatpush2.msra.mxu0 0.0
        %1967 = vmatprep.subr.mxu0 0.0
        %1968 = vmatpush2.msra.mxu0 0.0
        %1969 = vmatprep.subr.mxu0 0.0
        %1970 = vmatpush2.msra.mxu0 0.0
        %1971 = vmatprep.subr.mxu0 0.0
        %1972 = vmatpush2.msra.mxu0 0.0
        %1973 = vmatprep.subr.mxu0 0.0
        %1974 = vmatpush2.msra.mxu0 0.0
        %1975 = vmatprep.subr.mxu0 0.0
        %1976 = vmatpush2.msra.mxu0 0.0
        %1977 = vmatprep.subr.mxu0 0.0
        %1978 = vmatpush2.msra.mxu0 0.0
        %1979 = vmatprep.subr.mxu0 0.0
        %1980 = vmatpush2.msra.mxu0 0.0
        %1981 = vmatprep.subr.mxu0 0.0
        %1982 = vmatpush2.msra.mxu0 0.0
        %1983 = vmatprep.subr.mxu0 0.0
        %1984 = vmatpush2.msra.mxu0 0.0
        %1985 = vmatprep.subr.mxu0 0.0
        %1986 = vmatpush2.msra.mxu0 0.0
        %1987 = vmatprep.subr.mxu0 0.0
        %1988 = vmatpush2.msra.mxu0 0.0
        %1989 = vmatprep.subr.mxu0 0.0
        %1990 = vmatpush2.msra.mxu0 0.0
        %1991 = vmatprep.subr.mxu0 0.0
        %1992 = vmatpush2.msra.mxu0 0.0
        %1993 = vmatprep.subr.mxu0 0.0
        %1994 = vmatpush2.msra.mxu0 0.0
        %1995 = vmatprep.mubr.f32.mxu0 0.0
        %1996 = vmatmul.mubr.f32.gmra.mxu0 %v1723
        %v1997 = vpop.f32.mrf.mxu0
        %v1998 = vadd.f32 %v1644, %v1997
        %v1999 = vpop.f32.mrf.mxu0
        %v2000 = vadd.f32 %v1644, %v1999
        %2001 = vmatprep.mubr.f32.mxu0 0.0
        %2002 = vmatmul.mubr.f32.gmra.mxu0 %v1726
        %v2003 = vpop.f32.mrf.mxu0
        %v2004 = vadd.f32 %v1649, %v2003
        %v2005 = vpop.f32.mrf.mxu0
        %v2006 = vadd.f32 %v1649, %v2005
        %2007 = vmatprep.mubr.f32.mxu0 0.0
        %2008 = vmatmul.mubr.f32.gmra.mxu0 %v1729
        %v2009 = vpop.f32.mrf.mxu0
        %v2010 = vadd.f32 %v1654, %v2009
        %v2011 = vpop.f32.mrf.mxu0
        %v2012 = vadd.f32 %v1654, %v2011
        %2013 = vmatprep.mubr.f32.mxu0 0.0
        %2014 = vmatmul.mubr.f32.gmra.mxu0 %v1732
        %v2015 = vpop.f32.mrf.mxu0
        %v2016 = vadd.f32 %v1659, %v2015
        %v2017 = vpop.f32.mrf.mxu0
        %v2018 = vadd.f32 %v1659, %v2017
        %2019 = vmatprep.mubr.f32.mxu0 0.0
        %2020 = vmatmul.mubr.f32.gmra.mxu0 %v1735
        %v2021 = vpop.f32.mrf.mxu0
        %v2022 = vadd.f32 %v1664, %v2021
        %v2023 = vpop.f32.mrf.mxu0
        %v2024 = vadd.f32 %v1664, %v2023
        %2025 = vmatprep.mubr.f32.mxu0 0.0
        %2026 = vmatmul.mubr.f32.gmra.mxu0 %v1738
        %v2027 = vpop.f32.mrf.mxu0
        %v2028 = vadd.f32 %v1669, %v2027
        %v2029 = vpop.f32.mrf.mxu0
        %v2030 = vadd.f32 %v1669, %v2029
        %2031 = vmatprep.mubr.f32.mxu0 0.0
        %2032 = vmatmul.mubr.f32.gmra.mxu0 %v1741
        %v2033 = vpop.f32.mrf.mxu0
        %v2034 = vadd.f32 %v1674, %v2033
        %v2035 = vpop.f32.mrf.mxu0
        %v2036 = vadd.f32 %v1674, %v2035
        %2037 = vmatprep.mubr.f32.mxu0 0.0
        %2038 = vmatmul.mubr.f32.gmra.mxu0 %v1744
        %v2039 = vpop.f32.mrf.mxu0
        %v2040 = vadd.f32 %v1679, %v2039
        %v2041 = vpop.f32.mrf.mxu0
        %v2042 = vadd.f32 %v1679, %v2041
        %2043 = vmatprep.mubr.f32.mxu0 0.0
        %2044 = vmatmul.mubr.f32.gmra.mxu0 %v1747
        %v2045 = vpop.f32.mrf.mxu0
        %v2046 = vadd.f32 %v1684, %v2045
        %v2047 = vpop.f32.mrf.mxu0
        %v2048 = vadd.f32 %v1684, %v2047
        %2049 = vmatprep.mubr.f32.mxu0 0.0
        %2050 = vmatmul.mubr.f32.gmra.mxu0 %v1750
        %v2051 = vpop.f32.mrf.mxu0
        %v2052 = vadd.f32 %v1689, %v2051
        %v2053 = vpop.f32.mrf.mxu0
        %v2054 = vadd.f32 %v1689, %v2053
        %2055 = vmatprep.mubr.f32.mxu0 0.0
        %2056 = vmatmul.mubr.f32.gmra.mxu0 %v1753
        %v2057 = vpop.f32.mrf.mxu0
        %v2058 = vadd.f32 %v1694, %v2057
        %v2059 = vpop.f32.mrf.mxu0
        %v2060 = vadd.f32 %v1694, %v2059
        %2061 = vmatprep.mubr.f32.mxu0 0.0
        %2062 = vmatmul.mubr.f32.gmra.mxu0 %v1756
        %v2063 = vpop.f32.mrf.mxu0
        %v2064 = vadd.f32 %v1699, %v2063
        %v2065 = vpop.f32.mrf.mxu0
        %v2066 = vadd.f32 %v1699, %v2065
        %2067 = vmatprep.mubr.f32.mxu0 0.0
        %2068 = vmatmul.mubr.f32.gmra.mxu0 %v1759
        %v2069 = vpop.f32.mrf.mxu0
        %v2070 = vadd.f32 %v1704, %v2069
        %v2071 = vpop.f32.mrf.mxu0
        %v2072 = vadd.f32 %v1704, %v2071
        %2073 = vmatprep.mubr.f32.mxu0 0.0
        %2074 = vmatmul.mubr.f32.gmra.mxu0 %v1762
        %v2075 = vpop.f32.mrf.mxu0
        %v2076 = vadd.f32 %v1709, %v2075
        %v2077 = vpop.f32.mrf.mxu0
        %v2078 = vadd.f32 %v1709, %v2077
        %2079 = vmatprep.mubr.f32.mxu0 0.0
        %2080 = vmatmul.mubr.f32.gmra.mxu0 %v1765
        %v2081 = vpop.f32.mrf.mxu0
        %v2082 = vadd.f32 %v1714, %v2081
        %v2083 = vpop.f32.mrf.mxu0
        %v2084 = vadd.f32 %v1714, %v2083
        %2085 = vmatprep.mubr.f32.mxu0 0.0
        %2086 = vmatmul.mubr.f32.gmra.mxu0 %v1768
        %v2087 = vpop.f32.mrf.mxu0
        %v2088 = vadd.f32 %v1719, %v2087
        %v2089 = vpop.f32.mrf.mxu0
        %v2090 = vadd.f32 %v1719, %v2089
        %2091 = vdwg.mxu0
        %2092 = vmatprep.subr.mxu0 0.0
        %2093 = vmatpush1.msra.mxu0 0.0
        %2094 = vmatprep.subr.mxu0 0.0
        %2095 = vmatpush1.msra.mxu0 0.0
        %2096 = vmatprep.subr.mxu0 0.0
        %2097 = vmatpush1.msra.mxu0 0.0
        %2098 = vmatprep.subr.mxu0 0.0
        %2099 = vmatpush1.msra.mxu0 0.0
        %2100 = vmatprep.subr.mxu0 0.0
        %2101 = vmatpush1.msra.mxu0 0.0
        %2102 = vmatprep.subr.mxu0 0.0
        %2103 = vmatpush1.msra.mxu0 0.0
        %2104 = vmatprep.subr.mxu0 0.0
        %2105 = vmatpush1.msra.mxu0 0.0
        %2106 = vmatprep.subr.mxu0 0.0
        %2107 = vmatpush1.msra.mxu0 0.0
        %2108 = vmatprep.subr.mxu0 %v1606
        %2109 = vmatpush1.msra.mxu0 %v1605
        %2110 = vmatprep.subr.mxu0 %v1598
        %2111 = vmatpush1.msra.mxu0 %v1597
        %2112 = vmatprep.subr.mxu0 %v1590
        %2113 = vmatpush1.msra.mxu0 %v1589
        %2114 = vmatprep.subr.mxu0 %v1582
        %2115 = vmatpush1.msra.mxu0 %v1581
        %2116 = vmatprep.subr.mxu0 %v1574
        %2117 = vmatpush1.msra.mxu0 %v1573
        %2118 = vmatprep.subr.mxu0 %v1566
        %2119 = vmatpush1.msra.mxu0 %v1565
        %2120 = vmatprep.subr.mxu0 %v1558
        %2121 = vmatpush1.msra.mxu0 %v1557
        %2122 = vmatprep.subr.mxu0 %v1550
        %2123 = vmatpush1.msra.mxu0 %v1549
        %2124 = vmatprep.subr.mxu0 0.0
        %2125 = vmatpush2.msra.mxu0 0.0
        %2126 = vmatprep.subr.mxu0 0.0
        %2127 = vmatpush2.msra.mxu0 0.0
        %2128 = vmatprep.subr.mxu0 0.0
        %2129 = vmatpush2.msra.mxu0 0.0
        %2130 = vmatprep.subr.mxu0 0.0
        %2131 = vmatpush2.msra.mxu0 0.0
        %2132 = vmatprep.subr.mxu0 0.0
        %2133 = vmatpush2.msra.mxu0 0.0
        %2134 = vmatprep.subr.mxu0 0.0
        %2135 = vmatpush2.msra.mxu0 0.0
        %2136 = vmatprep.subr.mxu0 0.0
        %2137 = vmatpush2.msra.mxu0 0.0
        %2138 = vmatprep.subr.mxu0 0.0
        %2139 = vmatpush2.msra.mxu0 0.0
        %2140 = vmatprep.subr.mxu0 0.0
        %2141 = vmatpush2.msra.mxu0 0.0
        %2142 = vmatprep.subr.mxu0 0.0
        %2143 = vmatpush2.msra.mxu0 0.0
        %2144 = vmatprep.subr.mxu0 0.0
        %2145 = vmatpush2.msra.mxu0 0.0
        %2146 = vmatprep.subr.mxu0 0.0
        %2147 = vmatpush2.msra.mxu0 0.0
        %2148 = vmatprep.subr.mxu0 0.0
        %2149 = vmatpush2.msra.mxu0 0.0
        %2150 = vmatprep.subr.mxu0 0.0
        %2151 = vmatpush2.msra.mxu0 0.0
        %2152 = vmatprep.subr.mxu0 0.0
        %2153 = vmatpush2.msra.mxu0 0.0
        %2154 = vmatprep.subr.mxu0 0.0
        %2155 = vmatpush2.msra.mxu0 0.0
        %2156 = vmatprep.mubr.f32.mxu0 0.0
        %2157 = vmatmul.mubr.f32.gmra.mxu0 %v1723
        %v2158 = vpop.f32.mrf.mxu0
        %v2159 = vadd.f32 %v1644, %v2158
        %v2160 = vpop.f32.mrf.mxu0
        %v2161 = vadd.f32 %v1644, %v2160
        %2162 = vmatprep.mubr.f32.mxu0 0.0
        %2163 = vmatmul.mubr.f32.gmra.mxu0 %v1726
        %v2164 = vpop.f32.mrf.mxu0
        %v2165 = vadd.f32 %v1649, %v2164
        %v2166 = vpop.f32.mrf.mxu0
        %v2167 = vadd.f32 %v1649, %v2166
        %2168 = vmatprep.mubr.f32.mxu0 0.0
        %2169 = vmatmul.mubr.f32.gmra.mxu0 %v1729
        %v2170 = vpop.f32.mrf.mxu0
        %v2171 = vadd.f32 %v1654, %v2170
        %v2172 = vpop.f32.mrf.mxu0
        %v2173 = vadd.f32 %v1654, %v2172
        %2174 = vmatprep.mubr.f32.mxu0 0.0
        %2175 = vmatmul.mubr.f32.gmra.mxu0 %v1732
        %v2176 = vpop.f32.mrf.mxu0
        %v2177 = vadd.f32 %v1659, %v2176
        %v2178 = vpop.f32.mrf.mxu0
        %v2179 = vadd.f32 %v1659, %v2178
        %2180 = vmatprep.mubr.f32.mxu0 0.0
        %2181 = vmatmul.mubr.f32.gmra.mxu0 %v1735
        %v2182 = vpop.f32.mrf.mxu0
        %v2183 = vadd.f32 %v1664, %v2182
        %v2184 = vpop.f32.mrf.mxu0
        %v2185 = vadd.f32 %v1664, %v2184
        %2186 = vmatprep.mubr.f32.mxu0 0.0
        %2187 = vmatmul.mubr.f32.gmra.mxu0 %v1738
        %v2188 = vpop.f32.mrf.mxu0
        %v2189 = vadd.f32 %v1669, %v2188
        %v2190 = vpop.f32.mrf.mxu0
        %v2191 = vadd.f32 %v1669, %v2190
        %2192 = vmatprep.mubr.f32.mxu0 0.0
        %2193 = vmatmul.mubr.f32.gmra.mxu0 %v1741
        %v2194 = vpop.f32.mrf.mxu0
        %v2195 = vadd.f32 %v1674, %v2194
        %v2196 = vpop.f32.mrf.mxu0
        %v2197 = vadd.f32 %v1674, %v2196
        %2198 = vmatprep.mubr.f32.mxu0 0.0
        %2199 = vmatmul.mubr.f32.gmra.mxu0 %v1744
        %v2200 = vpop.f32.mrf.mxu0
        %v2201 = vadd.f32 %v1679, %v2200
        %v2202 = vpop.f32.mrf.mxu0
        %v2203 = vadd.f32 %v1679, %v2202
        %2204 = vmatprep.mubr.f32.mxu0 0.0
        %2205 = vmatmul.mubr.f32.gmra.mxu0 %v1747
        %v2206 = vpop.f32.mrf.mxu0
        %v2207 = vadd.f32 %v1684, %v2206
        %v2208 = vpop.f32.mrf.mxu0
        %v2209 = vadd.f32 %v1684, %v2208
        %2210 = vmatprep.mubr.f32.mxu0 0.0
        %2211 = vmatmul.mubr.f32.gmra.mxu0 %v1750
        %v2212 = vpop.f32.mrf.mxu0
        %v2213 = vadd.f32 %v1689, %v2212
        %v2214 = vpop.f32.mrf.mxu0
        %v2215 = vadd.f32 %v1689, %v2214
        %2216 = vmatprep.mubr.f32.mxu0 0.0
        %2217 = vmatmul.mubr.f32.gmra.mxu0 %v1753
        %v2218 = vpop.f32.mrf.mxu0
        %v2219 = vadd.f32 %v1694, %v2218
        %v2220 = vpop.f32.mrf.mxu0
        %v2221 = vadd.f32 %v1694, %v2220
        %2222 = vmatprep.mubr.f32.mxu0 0.0
        %2223 = vmatmul.mubr.f32.gmra.mxu0 %v1756
        %v2224 = vpop.f32.mrf.mxu0
        %v2225 = vadd.f32 %v1699, %v2224
        %v2226 = vpop.f32.mrf.mxu0
        %v2227 = vadd.f32 %v1699, %v2226
        %2228 = vmatprep.mubr.f32.mxu0 0.0
        %2229 = vmatmul.mubr.f32.gmra.mxu0 %v1759
        %v2230 = vpop.f32.mrf.mxu0
        %v2231 = vadd.f32 %v1704, %v2230
        %v2232 = vpop.f32.mrf.mxu0
        %v2233 = vadd.f32 %v1704, %v2232
        %2234 = vmatprep.mubr.f32.mxu0 0.0
        %2235 = vmatmul.mubr.f32.gmra.mxu0 %v1762
        %v2236 = vpop.f32.mrf.mxu0
        %v2237 = vadd.f32 %v1709, %v2236
        %v2238 = vpop.f32.mrf.mxu0
        %v2239 = vadd.f32 %v1709, %v2238
        %2240 = vmatprep.mubr.f32.mxu0 0.0
        %2241 = vmatmul.mubr.f32.gmra.mxu0 %v1765
        %v2242 = vpop.f32.mrf.mxu0
        %v2243 = vadd.f32 %v1714, %v2242
        %v2244 = vpop.f32.mrf.mxu0
        %v2245 = vadd.f32 %v1714, %v2244
        %2246 = vmatprep.mubr.f32.mxu0 0.0
        %2247 = vmatmul.mubr.f32.gmra.mxu0 %v1768
        %v2248 = vpop.f32.mrf.mxu0
        %v2249 = vadd.f32 %v1719, %v2248
        %v2250 = vpop.f32.mrf.mxu0
        %v2251 = vadd.f32 %v1719, %v2250
        %2252 = vdwg.mxu0
        %2253 = vmatprep.subr.mxu0 0.0
        %2254 = vmatpush1.msra.mxu0 0.0
        %2255 = vmatprep.subr.mxu0 0.0
        %2256 = vmatpush1.msra.mxu0 0.0
        %2257 = vmatprep.subr.mxu0 0.0
        %2258 = vmatpush1.msra.mxu0 0.0
        %2259 = vmatprep.subr.mxu0 0.0
        %2260 = vmatpush1.msra.mxu0 0.0
        %2261 = vmatprep.subr.mxu0 0.0
        %2262 = vmatpush1.msra.mxu0 0.0
        %2263 = vmatprep.subr.mxu0 0.0
        %2264 = vmatpush1.msra.mxu0 0.0
        %2265 = vmatprep.subr.mxu0 0.0
        %2266 = vmatpush1.msra.mxu0 0.0
        %2267 = vmatprep.subr.mxu0 0.0
        %2268 = vmatpush1.msra.mxu0 0.0
        %2269 = vmatprep.subr.mxu0 %v1608
        %2270 = vmatpush1.msra.mxu0 %v1607
        %2271 = vmatprep.subr.mxu0 %v1600
        %2272 = vmatpush1.msra.mxu0 %v1599
        %2273 = vmatprep.subr.mxu0 %v1592
        %2274 = vmatpush1.msra.mxu0 %v1591
        %2275 = vmatprep.subr.mxu0 %v1584
        %2276 = vmatpush1.msra.mxu0 %v1583
        %2277 = vmatprep.subr.mxu0 %v1576
        %2278 = vmatpush1.msra.mxu0 %v1575
        %2279 = vmatprep.subr.mxu0 %v1568
        %2280 = vmatpush1.msra.mxu0 %v1567
        %2281 = vmatprep.subr.mxu0 %v1560
        %2282 = vmatpush1.msra.mxu0 %v1559
        %2283 = vmatprep.subr.mxu0 %v1552
        %2284 = vmatpush1.msra.mxu0 %v1551
        %2285 = vmatprep.subr.mxu0 0.0
        %2286 = vmatpush2.msra.mxu0 0.0
        %2287 = vmatprep.subr.mxu0 0.0
        %2288 = vmatpush2.msra.mxu0 0.0
        %2289 = vmatprep.subr.mxu0 0.0
        %2290 = vmatpush2.msra.mxu0 0.0
        %2291 = vmatprep.subr.mxu0 0.0
        %2292 = vmatpush2.msra.mxu0 0.0
        %2293 = vmatprep.subr.mxu0 0.0
        %2294 = vmatpush2.msra.mxu0 0.0
        %2295 = vmatprep.subr.mxu0 0.0
        %2296 = vmatpush2.msra.mxu0 0.0
        %2297 = vmatprep.subr.mxu0 0.0
        %2298 = vmatpush2.msra.mxu0 0.0
        %2299 = vmatprep.subr.mxu0 0.0
        %2300 = vmatpush2.msra.mxu0 0.0
        %2301 = vmatprep.subr.mxu0 0.0
        %2302 = vmatpush2.msra.mxu0 0.0
        %2303 = vmatprep.subr.mxu0 0.0
        %2304 = vmatpush2.msra.mxu0 0.0
        %2305 = vmatprep.subr.mxu0 0.0
        %2306 = vmatpush2.msra.mxu0 0.0
        %2307 = vmatprep.subr.mxu0 0.0
        %2308 = vmatpush2.msra.mxu0 0.0
        %2309 = vmatprep.subr.mxu0 0.0
        %2310 = vmatpush2.msra.mxu0 0.0
        %2311 = vmatprep.subr.mxu0 0.0
        %2312 = vmatpush2.msra.mxu0 0.0
        %2313 = vmatprep.subr.mxu0 0.0
        %2314 = vmatpush2.msra.mxu0 0.0
        %2315 = vmatprep.subr.mxu0 0.0
        %2316 = vmatpush2.msra.mxu0 0.0
        %2317 = vmatprep.mubr.f32.mxu0 0.0
        %2318 = vmatmul.mubr.f32.gmra.mxu0 %v1723
        %v2319 = vpop.f32.mrf.mxu0
        %v2320 = vadd.f32 %v1644, %v2319
        %v2321 = vpop.f32.mrf.mxu0
        %v2322 = vadd.f32 %v1644, %v2321
        %2323 = vmatprep.mubr.f32.mxu0 0.0
        %2324 = vmatmul.mubr.f32.gmra.mxu0 %v1726
        %v2325 = vpop.f32.mrf.mxu0
        %v2326 = vadd.f32 %v1649, %v2325
        %v2327 = vpop.f32.mrf.mxu0
        %v2328 = vadd.f32 %v1649, %v2327
        %2329 = vmatprep.mubr.f32.mxu0 0.0
        %2330 = vmatmul.mubr.f32.gmra.mxu0 %v1729
        %v2331 = vpop.f32.mrf.mxu0
        %v2332 = vadd.f32 %v1654, %v2331
        %v2333 = vpop.f32.mrf.mxu0
        %v2334 = vadd.f32 %v1654, %v2333
        %2335 = vmatprep.mubr.f32.mxu0 0.0
        %2336 = vmatmul.mubr.f32.gmra.mxu0 %v1732
        %v2337 = vpop.f32.mrf.mxu0
        %v2338 = vadd.f32 %v1659, %v2337
        %v2339 = vpop.f32.mrf.mxu0
        %v2340 = vadd.f32 %v1659, %v2339
        %2341 = vmatprep.mubr.f32.mxu0 0.0
        %2342 = vmatmul.mubr.f32.gmra.mxu0 %v1735
        %v2343 = vpop.f32.mrf.mxu0
        %v2344 = vadd.f32 %v1664, %v2343
        %v2345 = vpop.f32.mrf.mxu0
        %v2346 = vadd.f32 %v1664, %v2345
        %2347 = vmatprep.mubr.f32.mxu0 0.0
        %2348 = vmatmul.mubr.f32.gmra.mxu0 %v1738
        %v2349 = vpop.f32.mrf.mxu0
        %v2350 = vadd.f32 %v1669, %v2349
        %v2351 = vpop.f32.mrf.mxu0
        %v2352 = vadd.f32 %v1669, %v2351
        %2353 = vmatprep.mubr.f32.mxu0 0.0
        %2354 = vmatmul.mubr.f32.gmra.mxu0 %v1741
        %v2355 = vpop.f32.mrf.mxu0
        %v2356 = vadd.f32 %v1674, %v2355
        %v2357 = vpop.f32.mrf.mxu0
        %v2358 = vadd.f32 %v1674, %v2357
        %2359 = vmatprep.mubr.f32.mxu0 0.0
        %2360 = vmatmul.mubr.f32.gmra.mxu0 %v1744
        %v2361 = vpop.f32.mrf.mxu0
        %v2362 = vadd.f32 %v1679, %v2361
        %v2363 = vpop.f32.mrf.mxu0
        %v2364 = vadd.f32 %v1679, %v2363
        %2365 = vmatprep.mubr.f32.mxu0 0.0
        %2366 = vmatmul.mubr.f32.gmra.mxu0 %v1747
        %v2367 = vpop.f32.mrf.mxu0
        %v2368 = vadd.f32 %v1684, %v2367
        %v2369 = vpop.f32.mrf.mxu0
        %v2370 = vadd.f32 %v1684, %v2369
        %2371 = vmatprep.mubr.f32.mxu0 0.0
        %2372 = vmatmul.mubr.f32.gmra.mxu0 %v1750
        %v2373 = vpop.f32.mrf.mxu0
        %v2374 = vadd.f32 %v1689, %v2373
        %v2375 = vpop.f32.mrf.mxu0
        %v2376 = vadd.f32 %v1689, %v2375
        %2377 = vmatprep.mubr.f32.mxu0 0.0
        %2378 = vmatmul.mubr.f32.gmra.mxu0 %v1753
        %v2379 = vpop.f32.mrf.mxu0
        %v2380 = vadd.f32 %v1694, %v2379
        %v2381 = vpop.f32.mrf.mxu0
        %v2382 = vadd.f32 %v1694, %v2381
        %2383 = vmatprep.mubr.f32.mxu0 0.0
        %2384 = vmatmul.mubr.f32.gmra.mxu0 %v1756
        %v2385 = vpop.f32.mrf.mxu0
        %v2386 = vadd.f32 %v1699, %v2385
        %v2387 = vpop.f32.mrf.mxu0
        %v2388 = vadd.f32 %v1699, %v2387
        %2389 = vmatprep.mubr.f32.mxu0 0.0
        %2390 = vmatmul.mubr.f32.gmra.mxu0 %v1759
        %v2391 = vpop.f32.mrf.mxu0
        %v2392 = vadd.f32 %v1704, %v2391
        %v2393 = vpop.f32.mrf.mxu0
        %v2394 = vadd.f32 %v1704, %v2393
        %2395 = vmatprep.mubr.f32.mxu0 0.0
        %2396 = vmatmul.mubr.f32.gmra.mxu0 %v1762
        %v2397 = vpop.f32.mrf.mxu0
        %v2398 = vadd.f32 %v1709, %v2397
        %v2399 = vpop.f32.mrf.mxu0
        %v2400 = vadd.f32 %v1709, %v2399
        %2401 = vmatprep.mubr.f32.mxu0 0.0
        %2402 = vmatmul.mubr.f32.gmra.mxu0 %v1765
        %v2403 = vpop.f32.mrf.mxu0
        %v2404 = vadd.f32 %v1714, %v2403
        %v2405 = vpop.f32.mrf.mxu0
        %v2406 = vadd.f32 %v1714, %v2405
        %2407 = vmatprep.mubr.f32.mxu0 0.0
        %2408 = vmatmul.mubr.f32.gmra.mxu0 %v1768
        %v2409 = vpop.f32.mrf.mxu0
        %v2410 = vadd.f32 %v1719, %v2409
        %v2411 = vpop.f32.mrf.mxu0
        %v2412 = vadd.f32 %v1719, %v2411
        %2413 = vdwg.mxu0
        %v2414 = vmax.f32 %v1837, 0.0
        %v2415 = vmax.f32 %v1839, 0.0
        %v2416 = vmax.f32 %v1998, 0.0
        %v2417 = vmax.f32 %v2000, 0.0
        %v2418 = vmax.f32 %v2159, 0.0
        %v2419 = vmax.f32 %v2161, 0.0
        %v2420 = vmax.f32 %v2320, 0.0
        %v2421 = vmax.f32 %v2322, 0.0
        %v2422 = vmax.f32 %v1843, 0.0
        %v2423 = vmax.f32 %v1845, 0.0
        %v2424 = vmax.f32 %v2004, 0.0
        %v2425 = vmax.f32 %v2006, 0.0
        %v2426 = vmax.f32 %v2165, 0.0
        %v2427 = vmax.f32 %v2167, 0.0
        %v2428 = vmax.f32 %v2326, 0.0
        %v2429 = vmax.f32 %v2328, 0.0
        %v2430 = vmax.f32 %v1849, 0.0
        %v2431 = vmax.f32 %v1851, 0.0
        %v2432 = vmax.f32 %v2010, 0.0
        %v2433 = vmax.f32 %v2012, 0.0
        %v2434 = vmax.f32 %v2171, 0.0
        %v2435 = vmax.f32 %v2173, 0.0
        %v2436 = vmax.f32 %v2332, 0.0
        %v2437 = vmax.f32 %v2334, 0.0
        %v2438 = vmax.f32 %v1855, 0.0
        %v2439 = vmax.f32 %v1857, 0.0
        %v2440 = vmax.f32 %v2016, 0.0
        %v2441 = vmax.f32 %v2018, 0.0
        %v2442 = vmax.f32 %v2177, 0.0
        %v2443 = vmax.f32 %v2179, 0.0
        %v2444 = vmax.f32 %v2338, 0.0
        %v2445 = vmax.f32 %v2340, 0.0
        %v2446 = vmax.f32 %v1861, 0.0
        %v2447 = vmax.f32 %v1863, 0.0
        %v2448 = vmax.f32 %v2022, 0.0
        %v2449 = vmax.f32 %v2024, 0.0
        %v2450 = vmax.f32 %v2183, 0.0
        %v2451 = vmax.f32 %v2185, 0.0
        %v2452 = vmax.f32 %v2344, 0.0
        %v2453 = vmax.f32 %v2346, 0.0
        %v2454 = vmax.f32 %v1867, 0.0
        %v2455 = vmax.f32 %v1869, 0.0
        %v2456 = vmax.f32 %v2028, 0.0
        %v2457 = vmax.f32 %v2030, 0.0
        %v2458 = vmax.f32 %v2189, 0.0
        %v2459 = vmax.f32 %v2191, 0.0
        %v2460 = vmax.f32 %v2350, 0.0
        %v2461 = vmax.f32 %v2352, 0.0
        %v2462 = vmax.f32 %v1873, 0.0
        %v2463 = vmax.f32 %v1875, 0.0
        %v2464 = vmax.f32 %v2034, 0.0
        %v2465 = vmax.f32 %v2036, 0.0
        %v2466 = vmax.f32 %v2195, 0.0
        %v2467 = vmax.f32 %v2197, 0.0
        %v2468 = vmax.f32 %v2356, 0.0
        %v2469 = vmax.f32 %v2358, 0.0
        %v2470 = vmax.f32 %v1879, 0.0
        %v2471 = vmax.f32 %v1881, 0.0
        %v2472 = vmax.f32 %v2040, 0.0
        %v2473 = vmax.f32 %v2042, 0.0
        %v2474 = vmax.f32 %v2201, 0.0
        %v2475 = vmax.f32 %v2203, 0.0
        %v2476 = vmax.f32 %v2362, 0.0
        %v2477 = vmax.f32 %v2364, 0.0
        %v2478 = vmax.f32 %v1885, 0.0
        %v2479 = vmax.f32 %v1887, 0.0
        %v2480 = vmax.f32 %v2046, 0.0
        %v2481 = vmax.f32 %v2048, 0.0
        %v2482 = vmax.f32 %v2207, 0.0
        %v2483 = vmax.f32 %v2209, 0.0
        %v2484 = vmax.f32 %v2368, 0.0
        %v2485 = vmax.f32 %v2370, 0.0
        %v2486 = vmax.f32 %v1891, 0.0
        %v2487 = vmax.f32 %v1893, 0.0
        %v2488 = vmax.f32 %v2052, 0.0
        %v2489 = vmax.f32 %v2054, 0.0
        %v2490 = vmax.f32 %v2213, 0.0
        %v2491 = vmax.f32 %v2215, 0.0
        %v2492 = vmax.f32 %v2374, 0.0
        %v2493 = vmax.f32 %v2376, 0.0
        %v2494 = vmax.f32 %v1897, 0.0
        %v2495 = vmax.f32 %v1899, 0.0
        %v2496 = vmax.f32 %v2058, 0.0
        %v2497 = vmax.f32 %v2060, 0.0
        %v2498 = vmax.f32 %v2219, 0.0
        %v2499 = vmax.f32 %v2221, 0.0
        %v2500 = vmax.f32 %v2380, 0.0
        %v2501 = vmax.f32 %v2382, 0.0
        %v2502 = vmax.f32 %v1903, 0.0
        %v2503 = vmax.f32 %v1905, 0.0
        %v2504 = vmax.f32 %v2064, 0.0
        %v2505 = vmax.f32 %v2066, 0.0
        %v2506 = vmax.f32 %v2225, 0.0
        %v2507 = vmax.f32 %v2227, 0.0
        %v2508 = vmax.f32 %v2386, 0.0
        %v2509 = vmax.f32 %v2388, 0.0
        %v2510 = vmax.f32 %v1909, 0.0
        %v2511 = vmax.f32 %v1911, 0.0
        %v2512 = vmax.f32 %v2070, 0.0
        %v2513 = vmax.f32 %v2072, 0.0
        %v2514 = vmax.f32 %v2231, 0.0
        %v2515 = vmax.f32 %v2233, 0.0
        %v2516 = vmax.f32 %v2392, 0.0
        %v2517 = vmax.f32 %v2394, 0.0
        %v2518 = vmax.f32 %v1915, 0.0
        %v2519 = vmax.f32 %v1917, 0.0
        %v2520 = vmax.f32 %v2076, 0.0
        %v2521 = vmax.f32 %v2078, 0.0
        %v2522 = vmax.f32 %v2237, 0.0
        %v2523 = vmax.f32 %v2239, 0.0
        %v2524 = vmax.f32 %v2398, 0.0
        %v2525 = vmax.f32 %v2400, 0.0
        %v2526 = vmax.f32 %v1921, 0.0
        %v2527 = vmax.f32 %v1923, 0.0
        %v2528 = vmax.f32 %v2082, 0.0
        %v2529 = vmax.f32 %v2084, 0.0
        %v2530 = vmax.f32 %v2243, 0.0
        %v2531 = vmax.f32 %v2245, 0.0
        %v2532 = vmax.f32 %v2404, 0.0
        %v2533 = vmax.f32 %v2406, 0.0
        %v2534 = vmax.f32 %v1927, 0.0
        %v2535 = vmax.f32 %v1929, 0.0
        %v2536 = vmax.f32 %v2088, 0.0
        %v2537 = vmax.f32 %v2090, 0.0
        %v2538 = vmax.f32 %v2249, 0.0
        %v2539 = vmax.f32 %v2251, 0.0
        %v2540 = vmax.f32 %v2410, 0.0
        %v2541 = vmax.f32 %v2412, 0.0
        %v2542 = vadd.f32 %v2414, %v2415
        %v2543 = vadd.f32 %v2422, %v2423
        %v2544 = vadd.f32 %v2430, %v2431
        %v2545 = vadd.f32 %v2438, %v2439
        %v2546 = vadd.f32 %v2446, %v2447
        %v2547 = vadd.f32 %v2454, %v2455
        %v2548 = vadd.f32 %v2462, %v2463
        %v2549 = vadd.f32 %v2470, %v2471
        %v2550 = vadd.f32 %v2478, %v2479
        %v2551 = vadd.f32 %v2486, %v2487
        %v2552 = vadd.f32 %v2494, %v2495
        %v2553 = vadd.f32 %v2502, %v2503
        %v2554 = vadd.f32 %v2510, %v2511
        %v2555 = vadd.f32 %v2518, %v2519
        %v2556 = vadd.f32 %v2526, %v2527
        %v2557 = vadd.f32 %v2534, %v2535
        %v2558 = vadd.f32 %v2542, %v2416
        %v2559 = vadd.f32 %v2543, %v2424
        %v2560 = vadd.f32 %v2544, %v2432
        %v2561 = vadd.f32 %v2545, %v2440
        %v2562 = vadd.f32 %v2546, %v2448
        %v2563 = vadd.f32 %v2547, %v2456
        %v2564 = vadd.f32 %v2548, %v2464
        %v2565 = vadd.f32 %v2549, %v2472
        %v2566 = vadd.f32 %v2550, %v2480
        %v2567 = vadd.f32 %v2551, %v2488
        %v2568 = vadd.f32 %v2552, %v2496
        %v2569 = vadd.f32 %v2553, %v2504
        %v2570 = vadd.f32 %v2554, %v2512
        %v2571 = vadd.f32 %v2555, %v2520
        %v2572 = vadd.f32 %v2556, %v2528
        %v2573 = vadd.f32 %v2557, %v2536
        %v2574 = vadd.f32 %v2558, %v2417
        %v2575 = vadd.f32 %v2559, %v2425
        %v2576 = vadd.f32 %v2560, %v2433
        %v2577 = vadd.f32 %v2561, %v2441
        %v2578 = vadd.f32 %v2562, %v2449
        %v2579 = vadd.f32 %v2563, %v2457
        %v2580 = vadd.f32 %v2564, %v2465
        %v2581 = vadd.f32 %v2565, %v2473
        %v2582 = vadd.f32 %v2566, %v2481
        %v2583 = vadd.f32 %v2567, %v2489
        %v2584 = vadd.f32 %v2568, %v2497
        %v2585 = vadd.f32 %v2569, %v2505
        %v2586 = vadd.f32 %v2570, %v2513
        %v2587 = vadd.f32 %v2571, %v2521
        %v2588 = vadd.f32 %v2572, %v2529
        %v2589 = vadd.f32 %v2573, %v2537
        %v2590 = vadd.f32 %v2574, %v2418
        %v2591 = vadd.f32 %v2575, %v2426
        %v2592 = vadd.f32 %v2576, %v2434
        %v2593 = vadd.f32 %v2577, %v2442
        %v2594 = vadd.f32 %v2578, %v2450
        %v2595 = vadd.f32 %v2579, %v2458
        %v2596 = vadd.f32 %v2580, %v2466
        %v2597 = vadd.f32 %v2581, %v2474
        %v2598 = vadd.f32 %v2582, %v2482
        %v2599 = vadd.f32 %v2583, %v2490
        %v2600 = vadd.f32 %v2584, %v2498
        %v2601 = vadd.f32 %v2585, %v2506
        %v2602 = vadd.f32 %v2586, %v2514
        %v2603 = vadd.f32 %v2587, %v2522
        %v2604 = vadd.f32 %v2588, %v2530
        %v2605 = vadd.f32 %v2589, %v2538
        %v2606 = vadd.f32 %v2590, %v2419
        %v2607 = vadd.f32 %v2591, %v2427
        %v2608 = vadd.f32 %v2592, %v2435
        %v2609 = vadd.f32 %v2593, %v2443
        %v2610 = vadd.f32 %v2594, %v2451
        %v2611 = vadd.f32 %v2595, %v2459
        %v2612 = vadd.f32 %v2596, %v2467
        %v2613 = vadd.f32 %v2597, %v2475
        %v2614 = vadd.f32 %v2598, %v2483
        %v2615 = vadd.f32 %v2599, %v2491
        %v2616 = vadd.f32 %v2600, %v2499
        %v2617 = vadd.f32 %v2601, %v2507
        %v2618 = vadd.f32 %v2602, %v2515
        %v2619 = vadd.f32 %v2603, %v2523
        %v2620 = vadd.f32 %v2604, %v2531
        %v2621 = vadd.f32 %v2605, %v2539
        %v2622 = vadd.f32 %v2606, %v2420
        %v2623 = vadd.f32 %v2607, %v2428
        %v2624 = vadd.f32 %v2608, %v2436
        %v2625 = vadd.f32 %v2609, %v2444
        %v2626 = vadd.f32 %v2610, %v2452
        %v2627 = vadd.f32 %v2611, %v2460
        %v2628 = vadd.f32 %v2612, %v2468
        %v2629 = vadd.f32 %v2613, %v2476
        %v2630 = vadd.f32 %v2614, %v2484
        %v2631 = vadd.f32 %v2615, %v2492
        %v2632 = vadd.f32 %v2616, %v2500
        %v2633 = vadd.f32 %v2617, %v2508
        %v2634 = vadd.f32 %v2618, %v2516
        %v2635 = vadd.f32 %v2619, %v2524
        %v2636 = vadd.f32 %v2620, %v2532
        %v2637 = vadd.f32 %v2621, %v2540
        %v2638 = vadd.f32 %v2622, %v2421
        %v2639 = vadd.f32 %v2623, %v2429
        %v2640 = vadd.f32 %v2624, %v2437
        %v2641 = vadd.f32 %v2625, %v2445
        %v2642 = vadd.f32 %v2626, %v2453
        %v2643 = vadd.f32 %v2627, %v2461
        %v2644 = vadd.f32 %v2628, %v2469
        %v2645 = vadd.f32 %v2629, %v2477
        %v2646 = vadd.f32 %v2630, %v2485
        %v2647 = vadd.f32 %v2631, %v2493
        %v2648 = vadd.f32 %v2632, %v2501
        %v2649 = vadd.f32 %v2633, %v2509
        %v2650 = vadd.f32 %v2634, %v2517
        %v2651 = vadd.f32 %v2635, %v2525
        %v2652 = vadd.f32 %v2636, %v2533
        %v2653 = vadd.f32 %v2637, %v2541
        %v2654 = vmul.f32 %v2638, 0.125
        %v2655 = vmul.f32 %v2639, 0.125
        %v2656 = vmul.f32 %v2640, 0.125
        %v2657 = vmul.f32 %v2641, 0.125
        %v2658 = vmul.f32 %v2642, 0.125
        %v2659 = vmul.f32 %v2643, 0.125
        %v2660 = vmul.f32 %v2644, 0.125
        %v2661 = vmul.f32 %v2645, 0.125
        %v2662 = vmul.f32 %v2646, 0.125
        %v2663 = vmul.f32 %v2647, 0.125
        %v2664 = vmul.f32 %v2648, 0.125
        %v2665 = vmul.f32 %v2649, 0.125
        %v2666 = vmul.f32 %v2650, 0.125
        %v2667 = vmul.f32 %v2651, 0.125
        %v2668 = vmul.f32 %v2652, 0.125
        %v2669 = vmul.f32 %v2653, 0.125
        %v2670 = vld [vmem:[%s9] sm:$0xff]
        %v2671 = vld [vmem:[%s9 + $0x8] sm:$0xff]
        %v2672 = vld [vmem:[%s9 + $0x10] sm:$0xff]
        %v2673 = vld [vmem:[%s9 + $0x18] sm:$0xff]
        %v2674 = vld [vmem:[%s9 + $0x20] sm:$0xff]
        %v2675 = vld [vmem:[%s9 + $0x28] sm:$0xff]
        %v2676 = vld [vmem:[%s9 + $0x30] sm:$0xff]
        %v2677 = vld [vmem:[%s9 + $0x38] sm:$0xff]
        %v2678 = vld [vmem:[%s9 + $0x40] sm:$0xff]
        %v2679 = vld [vmem:[%s9 + $0x48] sm:$0xff]
        %v2680 = vld [vmem:[%s9 + $0x50] sm:$0xff]
        %v2681 = vld [vmem:[%s9 + $0x58] sm:$0xff]
        %v2682 = vld [vmem:[%s9 + $0x60] sm:$0xff]
        %v2683 = vld [vmem:[%s9 + $0x68] sm:$0xff]
        %v2684 = vld [vmem:[%s9 + $0x70] sm:$0xff]
        %v2685 = vld [vmem:[%s9 + $0x78] sm:$0xff]
        %v2686 = vld [vmem:[%s10] sm:$0xff]
        %v2687 = vld [vmem:[%s10 + $0x8] sm:$0xff]
        %v2688 = vld [vmem:[%s10 + $0x10] sm:$0xff]
        %v2689 = vld [vmem:[%s10 + $0x18] sm:$0xff]
        %v2690 = vld [vmem:[%s10 + $0x20] sm:$0xff]
        %v2691 = vld [vmem:[%s10 + $0x28] sm:$0xff]
        %v2692 = vld [vmem:[%s10 + $0x30] sm:$0xff]
        %v2693 = vld [vmem:[%s10 + $0x38] sm:$0xff]
        %v2694 = vld [vmem:[%s10 + $0x40] sm:$0xff]
        %v2695 = vld [vmem:[%s10 + $0x48] sm:$0xff]
        %v2696 = vld [vmem:[%s10 + $0x50] sm:$0xff]
        %v2697 = vld [vmem:[%s10 + $0x58] sm:$0xff]
        %v2698 = vld [vmem:[%s10 + $0x60] sm:$0xff]
        %v2699 = vld [vmem:[%s10 + $0x68] sm:$0xff]
        %v2700 = vld [vmem:[%s10 + $0x70] sm:$0xff]
        %v2701 = vld [vmem:[%s10 + $0x78] sm:$0xff]
        %2703 = vset.pattern.permute.xlu0 0
        %2704 = vperm.xlu0 %2703, %v2686
        %v2705 = vpop.permute.xlu0 %2704
        %2708 = vset.pattern.permute.xlu0 0
        %2709 = vperm.xlu0 %2708, %v2687
        %v2710 = vpop.permute.xlu0 %2709
        %2713 = vset.pattern.permute.xlu0 0
        %2714 = vperm.xlu0 %2713, %v2688
        %v2715 = vpop.permute.xlu0 %2714
        %2718 = vset.pattern.permute.xlu0 0
        %2719 = vperm.xlu0 %2718, %v2689
        %v2720 = vpop.permute.xlu0 %2719
        %2723 = vset.pattern.permute.xlu0 0
        %2724 = vperm.xlu0 %2723, %v2690
        %v2725 = vpop.permute.xlu0 %2724
        %2728 = vset.pattern.permute.xlu0 0
        %2729 = vperm.xlu0 %2728, %v2691
        %v2730 = vpop.permute.xlu0 %2729
        %2733 = vset.pattern.permute.xlu0 0
        %2734 = vperm.xlu0 %2733, %v2692
        %v2735 = vpop.permute.xlu0 %2734
        %2738 = vset.pattern.permute.xlu0 0
        %2739 = vperm.xlu0 %2738, %v2693
        %v2740 = vpop.permute.xlu0 %2739
        %2743 = vset.pattern.permute.xlu0 0
        %2744 = vperm.xlu0 %2743, %v2694
        %v2745 = vpop.permute.xlu0 %2744
        %2748 = vset.pattern.permute.xlu0 0
        %2749 = vperm.xlu0 %2748, %v2695
        %v2750 = vpop.permute.xlu0 %2749
        %2753 = vset.pattern.permute.xlu0 0
        %2754 = vperm.xlu0 %2753, %v2696
        %v2755 = vpop.permute.xlu0 %2754
        %2758 = vset.pattern.permute.xlu0 0
        %2759 = vperm.xlu0 %2758, %v2697
        %v2760 = vpop.permute.xlu0 %2759
        %2763 = vset.pattern.permute.xlu0 0
        %2764 = vperm.xlu0 %2763, %v2698
        %v2765 = vpop.permute.xlu0 %2764
        %2768 = vset.pattern.permute.xlu0 0
        %2769 = vperm.xlu0 %2768, %v2699
        %v2770 = vpop.permute.xlu0 %2769
        %2773 = vset.pattern.permute.xlu0 0
        %2774 = vperm.xlu0 %2773, %v2700
        %v2775 = vpop.permute.xlu0 %2774
        %2778 = vset.pattern.permute.xlu0 0
        %2779 = vperm.xlu0 %2778, %v2701
        %v2780 = vpop.permute.xlu0 %2779
        %v2783 = vsel %vm472, %v2670, 0
        %v2786 = vsel %vm472, %v2671, 0
        %v2789 = vsel %vm472, %v2672, 0
        %v2792 = vsel %vm472, %v2673, 0
        %v2795 = vsel %vm472, %v2674, 0
        %v2798 = vsel %vm472, %v2675, 0
        %v2801 = vsel %vm472, %v2676, 0
        %v2804 = vsel %vm472, %v2677, 0
        %v2807 = vsel %vm472, %v2678, 0
        %v2810 = vsel %vm472, %v2679, 0
        %v2813 = vsel %vm472, %v2680, 0
        %v2816 = vsel %vm472, %v2681, 0
        %v2819 = vsel %vm472, %v2682, 0
        %v2822 = vsel %vm472, %v2683, 0
        %v2825 = vsel %vm472, %v2684, 0
        %v2828 = vsel %vm472, %v2685, 0
        %2830 = vmatprep.subr.mxu0 0.0
        %2831 = vmatpush1.msra.mxu0 0.0
        %2832 = vmatprep.subr.mxu0 0.0
        %2833 = vmatpush1.msra.mxu0 0.0
        %2834 = vmatprep.subr.mxu0 0.0
        %2835 = vmatpush1.msra.mxu0 0.0
        %2836 = vmatprep.subr.mxu0 0.0
        %2837 = vmatpush1.msra.mxu0 0.0
        %2838 = vmatprep.subr.mxu0 0.0
        %2839 = vmatpush1.msra.mxu0 0.0
        %2840 = vmatprep.subr.mxu0 0.0
        %2841 = vmatpush1.msra.mxu0 0.0
        %2842 = vmatprep.subr.mxu0 0.0
        %2843 = vmatpush1.msra.mxu0 0.0
        %2844 = vmatprep.subr.mxu0 0.0
        %2845 = vmatpush1.msra.mxu0 0.0
        %2846 = vmatprep.subr.mxu0 0.0
        %2847 = vmatpush1.msra.mxu0 0.0
        %2848 = vmatprep.subr.mxu0 0.0
        %2849 = vmatpush1.msra.mxu0 0.0
        %2850 = vmatprep.subr.mxu0 0.0
        %2851 = vmatpush1.msra.mxu0 0.0
        %2852 = vmatprep.subr.mxu0 0.0
        %2853 = vmatpush1.msra.mxu0 0.0
        %2854 = vmatprep.subr.mxu0 0.0
        %2855 = vmatpush1.msra.mxu0 0.0
        %2856 = vmatprep.subr.mxu0 0.0
        %2857 = vmatpush1.msra.mxu0 0.0
        %2858 = vmatprep.subr.mxu0 0.0
        %2859 = vmatpush1.msra.mxu0 0.0
        %2860 = vmatprep.subr.mxu0 0.0
        %2861 = vmatpush1.msra.mxu0 %v487
        %2862 = vmatprep.subr.mxu0 0.0
        %2863 = vmatpush2.msra.mxu0 0.0
        %2864 = vmatprep.subr.mxu0 0.0
        %2865 = vmatpush2.msra.mxu0 0.0
        %2866 = vmatprep.subr.mxu0 0.0
        %2867 = vmatpush2.msra.mxu0 0.0
        %2868 = vmatprep.subr.mxu0 0.0
        %2869 = vmatpush2.msra.mxu0 0.0
        %2870 = vmatprep.subr.mxu0 0.0
        %2871 = vmatpush2.msra.mxu0 0.0
        %2872 = vmatprep.subr.mxu0 0.0
        %2873 = vmatpush2.msra.mxu0 0.0
        %2874 = vmatprep.subr.mxu0 0.0
        %2875 = vmatpush2.msra.mxu0 0.0
        %2876 = vmatprep.subr.mxu0 0.0
        %2877 = vmatpush2.msra.mxu0 0.0
        %2878 = vmatprep.subr.mxu0 0.0
        %2879 = vmatpush2.msra.mxu0 0.0
        %2880 = vmatprep.subr.mxu0 0.0
        %2881 = vmatpush2.msra.mxu0 0.0
        %2882 = vmatprep.subr.mxu0 0.0
        %2883 = vmatpush2.msra.mxu0 0.0
        %2884 = vmatprep.subr.mxu0 0.0
        %2885 = vmatpush2.msra.mxu0 0.0
        %2886 = vmatprep.subr.mxu0 0.0
        %2887 = vmatpush2.msra.mxu0 0.0
        %2888 = vmatprep.subr.mxu0 0.0
        %2889 = vmatpush2.msra.mxu0 0.0
        %2890 = vmatprep.subr.mxu0 0.0
        %2891 = vmatpush2.msra.mxu0 0.0
        %2892 = vmatprep.subr.mxu0 0.0
        %2893 = vmatpush2.msra.mxu0 0.0
        %2894 = vmatprep.mubr.f32.mxu0 0.0
        %2895 = vmatmul.mubr.f32.gmra.mxu0 %v2783
        %v2896 = vpop.f32.mrf.mxu0
        %v2897 = vadd.f32 %v2705, %v2896
        %v2898 = vpop.f32.mrf.mxu0
        %2899 = vmatprep.mubr.f32.mxu0 0.0
        %2900 = vmatmul.mubr.f32.gmra.mxu0 %v2786
        %v2901 = vpop.f32.mrf.mxu0
        %v2902 = vadd.f32 %v2710, %v2901
        %v2903 = vpop.f32.mrf.mxu0
        %2904 = vmatprep.mubr.f32.mxu0 0.0
        %2905 = vmatmul.mubr.f32.gmra.mxu0 %v2789
        %v2906 = vpop.f32.mrf.mxu0
        %v2907 = vadd.f32 %v2715, %v2906
        %v2908 = vpop.f32.mrf.mxu0
        %2909 = vmatprep.mubr.f32.mxu0 0.0
        %2910 = vmatmul.mubr.f32.gmra.mxu0 %v2792
        %v2911 = vpop.f32.mrf.mxu0
        %v2912 = vadd.f32 %v2720, %v2911
        %v2913 = vpop.f32.mrf.mxu0
        %2914 = vmatprep.mubr.f32.mxu0 0.0
        %2915 = vmatmul.mubr.f32.gmra.mxu0 %v2795
        %v2916 = vpop.f32.mrf.mxu0
        %v2917 = vadd.f32 %v2725, %v2916
        %v2918 = vpop.f32.mrf.mxu0
        %2919 = vmatprep.mubr.f32.mxu0 0.0
        %2920 = vmatmul.mubr.f32.gmra.mxu0 %v2798
        %v2921 = vpop.f32.mrf.mxu0
        %v2922 = vadd.f32 %v2730, %v2921
        %v2923 = vpop.f32.mrf.mxu0
        %2924 = vmatprep.mubr.f32.mxu0 0.0
        %2925 = vmatmul.mubr.f32.gmra.mxu0 %v2801
        %v2926 = vpop.f32.mrf.mxu0
        %v2927 = vadd.f32 %v2735, %v2926
        %v2928 = vpop.f32.mrf.mxu0
        %2929 = vmatprep.mubr.f32.mxu0 0.0
        %2930 = vmatmul.mubr.f32.gmra.mxu0 %v2804
        %v2931 = vpop.f32.mrf.mxu0
        %v2932 = vadd.f32 %v2740, %v2931
        %v2933 = vpop.f32.mrf.mxu0
        %2934 = vmatprep.mubr.f32.mxu0 0.0
        %2935 = vmatmul.mubr.f32.gmra.mxu0 %v2807
        %v2936 = vpop.f32.mrf.mxu0
        %v2937 = vadd.f32 %v2745, %v2936
        %v2938 = vpop.f32.mrf.mxu0
        %2939 = vmatprep.mubr.f32.mxu0 0.0
        %2940 = vmatmul.mubr.f32.gmra.mxu0 %v2810
        %v2941 = vpop.f32.mrf.mxu0
        %v2942 = vadd.f32 %v2750, %v2941
        %v2943 = vpop.f32.mrf.mxu0
        %2944 = vmatprep.mubr.f32.mxu0 0.0
        %2945 = vmatmul.mubr.f32.gmra.mxu0 %v2813
        %v2946 = vpop.f32.mrf.mxu0
        %v2947 = vadd.f32 %v2755, %v2946
        %v2948 = vpop.f32.mrf.mxu0
        %2949 = vmatprep.mubr.f32.mxu0 0.0
        %2950 = vmatmul.mubr.f32.gmra.mxu0 %v2816
        %v2951 = vpop.f32.mrf.mxu0
        %v2952 = vadd.f32 %v2760, %v2951
        %v2953 = vpop.f32.mrf.mxu0
        %2954 = vmatprep.mubr.f32.mxu0 0.0
        %2955 = vmatmul.mubr.f32.gmra.mxu0 %v2819
        %v2956 = vpop.f32.mrf.mxu0
        %v2957 = vadd.f32 %v2765, %v2956
        %v2958 = vpop.f32.mrf.mxu0
        %2959 = vmatprep.mubr.f32.mxu0 0.0
        %2960 = vmatmul.mubr.f32.gmra.mxu0 %v2822
        %v2961 = vpop.f32.mrf.mxu0
        %v2962 = vadd.f32 %v2770, %v2961
        %v2963 = vpop.f32.mrf.mxu0
        %2964 = vmatprep.mubr.f32.mxu0 0.0
        %2965 = vmatmul.mubr.f32.gmra.mxu0 %v2825
        %v2966 = vpop.f32.mrf.mxu0
        %v2967 = vadd.f32 %v2775, %v2966
        %v2968 = vpop.f32.mrf.mxu0
        %2969 = vmatprep.mubr.f32.mxu0 0.0
        %2970 = vmatmul.mubr.f32.gmra.mxu0 %v2828
        %v2971 = vpop.f32.mrf.mxu0
        %v2972 = vadd.f32 %v2780, %v2971
        %v2973 = vpop.f32.mrf.mxu0
        %2974 = vdwg.mxu0
        %v2975 = vadd.f32 %v2897, %v2654
        %v2976 = vadd.f32 %v2902, %v2655
        %v2977 = vadd.f32 %v2907, %v2656
        %v2978 = vadd.f32 %v2912, %v2657
        %v2979 = vadd.f32 %v2917, %v2658
        %v2980 = vadd.f32 %v2922, %v2659
        %v2981 = vadd.f32 %v2927, %v2660
        %v2982 = vadd.f32 %v2932, %v2661
        %v2983 = vadd.f32 %v2937, %v2662
        %v2984 = vadd.f32 %v2942, %v2663
        %v2985 = vadd.f32 %v2947, %v2664
        %v2986 = vadd.f32 %v2952, %v2665
        %v2987 = vadd.f32 %v2957, %v2666
        %v2988 = vadd.f32 %v2962, %v2667
        %v2989 = vadd.f32 %v2967, %v2668
        %v2990 = vadd.f32 %v2972, %v2669
        %v2991 = vmax.f32 %v2975, 0.0
        %v2992 = vmax.f32 %v2976, 0.0
        %v2993 = vmax.f32 %v2977, 0.0
        %v2994 = vmax.f32 %v2978, 0.0
        %v2995 = vmax.f32 %v2979, 0.0
        %v2996 = vmax.f32 %v2980, 0.0
        %v2997 = vmax.f32 %v2981, 0.0
        %v2998 = vmax.f32 %v2982, 0.0
        %v2999 = vmax.f32 %v2983, 0.0
        %v3000 = vmax.f32 %v2984, 0.0
        %v3001 = vmax.f32 %v2985, 0.0
        %v3002 = vmax.f32 %v2986, 0.0
        %v3003 = vmax.f32 %v2987, 0.0
        %v3004 = vmax.f32 %v2988, 0.0
        %v3005 = vmax.f32 %v2989, 0.0
        %v3006 = vmax.f32 %v2990, 0.0
        %3007 = vst [vmem:[%s425] sm:$0xff] %v2991
        %3008 = vst [vmem:[%s425 + $0x8] sm:$0xff] %v2992
        %3009 = vst [vmem:[%s425 + $0x10] sm:$0xff] %v2993
        %3010 = vst [vmem:[%s425 + $0x18] sm:$0xff] %v2994
        %3011 = vst [vmem:[%s425 + $0x20] sm:$0xff] %v2995
        %3012 = vst [vmem:[%s425 + $0x28] sm:$0xff] %v2996
        %3013 = vst [vmem:[%s425 + $0x30] sm:$0xff] %v2997
        %3014 = vst [vmem:[%s425 + $0x38] sm:$0xff] %v2998
        %3015 = vst [vmem:[%s425 + $0x40] sm:$0xff] %v2999
        %3016 = vst [vmem:[%s425 + $0x48] sm:$0xff] %v3000
        %3017 = vst [vmem:[%s425 + $0x50] sm:$0xff] %v3001
        %3018 = vst [vmem:[%s425 + $0x58] sm:$0xff] %v3002
        %3019 = vst [vmem:[%s425 + $0x60] sm:$0xff] %v3003
        %3020 = vst [vmem:[%s425 + $0x68] sm:$0xff] %v3004
        %3021 = vst [vmem:[%s425 + $0x70] sm:$0xff] %v3005
        %3022 = vst [vmem:[%s425 + $0x78] sm:$0xff] %v3006
        %s3023 = sand.u32 %s292, 1
        %s3024 = scalar_lea.sflag [#allocation3], %s3023
        %s3025 = sand.u32 %s292, 1
        %s3026 = smul.addr %s3025, 128
        %s3027 = scalar_lea.vmem [#allocation2], %s3026
        // Predicated region
        $region65: #{tpu_custom_call.1} parent=63 // pred_check
          %p3028 = pneg %p302
        $region66: #{tpu_custom_call.1} parent=63 // pred_check_branch
          %3030 = sbr.rel (%p3028) target = $region68
        $region67: #{tpu_custom_call.1} parent=63 // pred_region
          %s3032 = ssub.s32 2048, 2048
          %3033 = vsyncadd %s3024, %s3032
          %s3034 = smul.addr %s29, 16
          %s3035 = sadd.s32 %s30, %s3034
          %s3036 = smul.addr %s3035, 128
          %s3037 = scalar_lea.hbm %s11, %s3036
          %s3038 = sshll.u32 %s3027, 4
          %s3039 = int_to_ptr.vmem [resolvable:$true] %s3038
          %3044 = dma.vmem_to_hbm [thread:$0]  %s3039, 2048, %s3037, %s3024, 128, 128, 8
        $region68: #{tpu_custom_call.1} parent=63 // pred_fallthru
          _
      $region64: #{tpu_custom_call.1} parent=5 // pred_fallthru
        _
      %p3045 = scmp.le.s32.totalorder 2, %s20
      // Predicated region
      $region69: #{tpu_custom_call.1} parent=5 // pred_check
        %p3046 = pneg %p3045
      $region70: #{tpu_custom_call.1} parent=5 // pred_check_branch
        %3048 = sbr.rel (%p3046) target = $region72
      $region71: #{tpu_custom_call.1} parent=5 // pred_region
        %s3049 = ssub.s32 %s20, 2
        // Predicated region
        $region73: #{tpu_custom_call.1} parent=71 // pred_check
          %p3050 = pneg %p308
        $region74: #{tpu_custom_call.1} parent=71 // pred_check_branch
          %3052 = sbr.rel (%p3050) target = $region76
        $region75: #{tpu_custom_call.1} parent=71 // pred_region
          %s3053 = sand.u32 %s293, 1
          %s3054 = scalar_lea.sflag [#allocation3], %s3053
          %s3055 = sand.u32 %s293, 1
          %s3056 = smul.addr %s3055, 128
          %s3057 = scalar_lea.vmem [#allocation2], %s3056
          %3058 = dma.done %s3054, 2048
        $region76: #{tpu_custom_call.1} parent=71 // pred_fallthru
          _
      $region72: #{tpu_custom_call.1} parent=5 // pred_fallthru
        _
    $region6: #{tpu_custom_call.1} parent=1 // loop_footer
      %s24 = sadd.s32 1, %s20
    $region7: #{tpu_custom_call.1} parent=1 // loop_footer_branch
      %19 = sbr.rel target = $region3
    $region8: #{tpu_custom_call.1} parent=1 // loop_exit
      _
    %3059 = vsyncpa [#allocation3], 1
    %s3060 = scalar_lea.sflag [#allocation3], 1
    %3061 = vsyncpa %s3060, 1

</llo_original>
